<compile_context>
chip_gen: v5e
topology: v5e:2x2
jax: 0.10.0
libtpu: 0.0.40
codegen_flags: <defaults>
</compile_context>

<pallas_src>
import functools

import jax
import jax.numpy as jnp
from jax.experimental import pallas as pl
from jax.experimental.pallas import tpu as pltpu


# ----------------------------------------------------------------------------
# Pallas kernel: fused pre-LN transformer encoder layer for one batch element.
# ----------------------------------------------------------------------------
def encoder_layer_kernel(
    x_ref,                # (1, S, D)   bf16 activations (one batch element)
    wqkv_ref, bqkv_ref,   # (D, 3D) bf16, (1, 3D) f32   fused Q|K|V projection
    wo_ref, bo_ref,       # (D, D)  bf16, (1, D)  f32   attention output proj
    w1_ref, b1_ref,       # (D, F)  bf16, (1, F)  f32   FFN in
    w2_ref, b2_ref,       # (F, D)  bf16, (1, D)  f32   FFN out
    g1_ref, be1_ref,      # (1, D) f32  LayerNorm 1
    g2_ref, be2_ref,      # (1, D) f32  LayerNorm 2
    o_ref,                # (1, S, D)  f32
    *, nhead, eps, ffn_chunk,
):
    f32, bf16 = jnp.float32, jnp.bfloat16
    x = x_ref[0].astype(f32)                     # (S, D) residual path in f32
    S, D = x.shape
    hd = D // nhead
    scale = 1.0 / float(hd) ** 0.5

    def layer_norm(v, g, b):
        mu = jnp.mean(v, axis=-1, keepdims=True)
        var = jnp.mean((v - mu) ** 2, axis=-1, keepdims=True)
        return (v - mu) * jax.lax.rsqrt(var + eps) * g + b

    # ---------------- self-attention sub-block (pre-LN) ----------------
    xn = layer_norm(x, g1_ref[...], be1_ref[...])
    qkv = jnp.dot(xn.astype(bf16), wqkv_ref[...],
                  preferred_element_type=f32)                     # (S, 3D) f32
    b_all = bqkv_ref[...]                                         # (1, 3D)
    # Fold bias (and the 1/sqrt(hd) scale into q) per slice; only bf16 copies
    # of q/k/v stay live, the f32 qkv slab is consumed immediately.
    q = ((qkv[:, 0 * D:1 * D] + b_all[:, 0 * D:1 * D]) * scale).astype(bf16)
    k = (qkv[:, 1 * D:2 * D] + b_all[:, 1 * D:2 * D]).astype(bf16)
    v = (qkv[:, 2 * D:3 * D] + b_all[:, 2 * D:3 * D]).astype(bf16)

    # Head-batched attention: one batched dot_general per stage, no per-head
    # Python loop, single K transpose to (nhead, hd, S).
    qh = jnp.transpose(q.reshape(S, nhead, hd), (1, 0, 2))        # (H, S, hd)
    kt = jnp.transpose(k.reshape(S, nhead, hd), (1, 2, 0))        # (H, hd, S)
    vh = jnp.transpose(v.reshape(S, nhead, hd), (1, 0, 2))        # (H, S, hd)

    s = jax.lax.dot_general(qh, kt, (((2,), (1,)), ((0,), (0,))),
                            preferred_element_type=f32)           # (H, S, S)
    s = s - jnp.max(s, axis=-1, keepdims=True)
    p = jnp.exp(s)
    p = p * pl.reciprocal(jnp.sum(p, axis=-1, keepdims=True), approx=True)
    ctx = jax.lax.dot_general(p.astype(bf16), vh,
                              (((2,), (1,)), ((0,), (0,))),
                              preferred_element_type=f32)         # (H, S, hd)
    ctx = jnp.transpose(ctx, (1, 0, 2)).reshape(S, D)             # (S, D)

    # Single full-width output projection: (S, D) @ (D, D), K = D.
    attn = jnp.dot(ctx.astype(bf16), wo_ref[...], preferred_element_type=f32)
    x = x + attn + bo_ref[...]                   # dropout1 = identity (eval)

    # ---------------- feed-forward sub-block (pre-LN) ----------------
    xn2 = layer_norm(x, g2_ref[...], be2_ref[...]).astype(bf16)
    F_ = w1_ref.shape[1]
    n_chunks = F_ // ffn_chunk                   # static
    ffn = jnp.zeros((S, D), f32)
    # Chunk over F: peak hidden intermediate is (S, ffn_chunk) not (S, F).
    for c in range(n_chunks):
        sl = slice(c * ffn_chunk, (c + 1) * ffn_chunk)
        hid = jnp.dot(xn2, w1_ref[:, sl], preferred_element_type=f32) + b1_ref[:, sl]
        hid = jnp.maximum(hid, 0.0)              # relu
        ffn = ffn + jnp.dot(hid.astype(bf16), w2_ref[sl, :],
                            preferred_element_type=f32)
    x = x + ffn + b2_ref[...]                    # dropout/dropout2 = identity

    o_ref[0] = x.astype(o_ref.dtype)


# ----------------------------------------------------------------------------
# Wrapper
# ----------------------------------------------------------------------------
def encoder_layer(src, params, *, nhead, eps=1e-5, ffn_chunk=512):
    """src: (S, B, D) float32 (torch MultiheadAttention layout). Returns (S, B, D)."""
    S, B, D = src.shape
    F_ = params["w1"].shape[1]
    bf16 = jnp.bfloat16

    if F_ % ffn_chunk != 0:
        ffn_chunk = F_                           # small / non-divisible F: no chunking
    ffn_chunk = min(ffn_chunk, F_)

    # Boundary transpose to (B, S, D) + bf16 cast (halves activation DMA bytes;
    # LayerNorm/residual math is promoted back to f32 inside the kernel).
    x = jnp.transpose(src, (1, 0, 2)).astype(bf16)

    # Parameter glue (plain JAX, outside the kernel): fuse Q|K|V, cast the
    # matmul weights to bf16, keep biases / LayerNorm params in f32.
    wqkv = jnp.concatenate([params["wq"], params["wk"], params["wv"]], axis=1)
    bqkv = jnp.concatenate([params["bq"], params["bk"], params["bv"]])

    weights = [
        (wqkv.astype(bf16),         (D, 3 * D)),
        (bqkv,                      (1, 3 * D)),
        (params["wo"].astype(bf16), (D, D)),
        (params["bo"],              (1, D)),
        (params["w1"].astype(bf16), (D, F_)),
        (params["b1"],              (1, F_)),
        (params["w2"].astype(bf16), (F_, D)),
        (params["b2"],              (1, D)),
        (params["g1"],              (1, D)),
        (params["be1"],             (1, D)),
        (params["g2"],              (1, D)),
        (params["be2"],             (1, D)),
    ]

    def const_spec(shape):
        # Full-array block with a constant index map: fetched into VMEM once,
        # never re-fetched across the batch grid.
        return pl.BlockSpec(shape, lambda b: (0,) * len(shape))

    in_specs = [pl.BlockSpec((1, S, D), lambda b: (b, 0, 0))]
    args = [x]
    for arr, shp in weights:
        in_specs.append(const_spec(shp))
        args.append(arr.reshape(shp))

    # Scoped VMEM sized from the actual working set (weights are still
    # double-buffered by the default pipeline => 2x weight bytes), clamped to
    # a range that is safe on v5e/v6e (128 MiB) and v7x (64 MiB).
    weight_bytes = sum(int(a.size) * a.dtype.itemsize for a, _ in weights)
    act_bytes = 2 * (S * D * 2) + 2 * (S * D * 4)        # bf16 in + f32 out, 2-buffered
    interm_bytes = 4 * (6 * S * D + nhead * S * S + S * ffn_chunk + 3 * S * D)
    vmem_limit = int(min(96 * 2 ** 20,
                         max(32 * 2 ** 20,
                             2 * weight_bytes + act_bytes + interm_bytes)))

    kernel = functools.partial(encoder_layer_kernel, nhead=nhead, eps=eps,
                               ffn_chunk=ffn_chunk)
    out = pl.pallas_call(
        kernel,
        out_shape=jax.ShapeDtypeStruct((B, S, D), src.dtype),
        grid=(B,),
        in_specs=in_specs,
        out_specs=pl.BlockSpec((1, S, D), lambda b: (b, 0, 0)),
        compiler_params=pltpu.CompilerParams(
            dimension_semantics=("parallel",),           # megacore: shard the batch
            vmem_limit_bytes=vmem_limit,
        ),
    )(*args)
    return jnp.transpose(out, (1, 0, 2))                 # back to (S, B, D)


# ----------------------------------------------------------------------------
# PHM parameter construction (glue, plain JAX)
# ----------------------------------------------------------------------------
def phm_dense_weight(key, n, in_f, out_f, scale=0.1):
    """W(out,in) = sum_i kron(A_i, S_i); returned transposed as (in, out)."""
    ka, ks = jax.random.split(key)
    A = jax.random.normal(ka, (n, n, n), jnp.float32) * scale
    Smat = jax.random.normal(ks, (n, out_f // n, in_f // n), jnp.float32) * scale
    W = jnp.einsum("ipq,irc->prqc", A, Smat).reshape(out_f, in_f)
    return W.T  # (in, out) so the kernel computes x @ W


def make_params(key, n, d_model, dim_ff):
    keys = jax.random.split(key, 12)
    p = {}
    p["wq"] = phm_dense_weight(keys[0], n, d_model, d_model)
    p["wk"] = phm_dense_weight(keys[1], n, d_model, d_model)
    p["wv"] = phm_dense_weight(keys[2], n, d_model, d_model)
    p["wo"] = phm_dense_weight(keys[3], n, d_model, d_model)
    p["w1"] = phm_dense_weight(keys[4], n, d_model, dim_ff)
    p["w2"] = phm_dense_weight(keys[5], n, dim_ff, d_model)
    p["bq"] = jax.random.normal(keys[6], (d_model,), jnp.float32) * 0.02
    p["bk"] = jax.random.normal(keys[7], (d_model,), jnp.float32) * 0.02
    p["bv"] = jax.random.normal(keys[8], (d_model,), jnp.float32) * 0.02
    p["bo"] = jax.random.normal(keys[9], (d_model,), jnp.float32) * 0.02
    p["b1"] = jax.random.normal(keys[10], (dim_ff,), jnp.float32) * 0.02
    p["b2"] = jax.random.normal(keys[11], (d_model,), jnp.float32) * 0.02
    p["g1"] = jnp.ones((d_model,), jnp.float32)
    p["be1"] = jnp.zeros((d_model,), jnp.float32)
    p["g2"] = jnp.ones((d_model,), jnp.float32)
    p["be2"] = jnp.zeros((d_model,), jnp.float32)
    return p


# ----------------------------------------------------------------------------
# Pure-JAX f32 reference (mirrors the PyTorch forward, eval mode)
# ----------------------------------------------------------------------------
def reference(src, params, *, nhead, eps=1e-5):
    x = jnp.transpose(src, (1, 0, 2))               # (B, S, D)
    B, S, D = x.shape
    hd = D // nhead

    def ln(v, g, b):
        mu = jnp.mean(v, axis=-1, keepdims=True)
        var = jnp.mean((v - mu) ** 2, axis=-1, keepdims=True)
        return (v - mu) / jnp.sqrt(var + eps) * g + b

    xn = ln(x, params["g1"], params["be1"])
    q = xn @ params["wq"] + params["bq"]
    k = xn @ params["wk"] + params["bk"]
    v = xn @ params["wv"] + params["bv"]
    qh = q.reshape(B, S, nhead, hd)
    kh = k.reshape(B, S, nhead, hd)
    vh = v.reshape(B, S, nhead, hd)
    scores = jnp.einsum("bshd,bthd->bhst", qh, kh) / jnp.sqrt(jnp.float32(hd))
    p = jax.nn.softmax(scores, axis=-1)
    attn = jnp.einsum("bhst,bthd->bshd", p, vh).reshape(B, S, D)
    attn = attn @ params["wo"] + params["bo"]
    x = x + attn

    xn2 = ln(x, params["g2"], params["be2"])
    hid = jnp.maximum(xn2 @ params["w1"] + params["b1"], 0.0)
    ffn = hid @ params["w2"] + params["b2"]
    x = x + ffn
    return jnp.transpose(x, (1, 0, 2))


# ----------------------------------------------------------------------------
if __name__ == "__main__":
    n, d_model, nhead, dim_ff = 4, 32, 4, 64
    S, B = 8, 2

    key = jax.random.PRNGKey(0)
    k_src, k_par = jax.random.split(key)
    src = jax.random.normal(k_src, (S, B, d_model), jnp.float32)
    params = make_params(k_par, n, d_model, dim_ff)

    out = jax.block_until_ready(encoder_layer(src, params, nhead=nhead))
    ref = reference(src, params, nhead=nhead)

    assert out.shape == (S, B, d_model)
    max_err = float(jnp.max(jnp.abs(out - ref)))
    # bf16 activations + bf16 matmuls vs f32 reference -> relaxed tolerance
    assert jnp.allclose(out, ref, rtol=3e-2, atol=3e-2), max_err
    print("KERNEL_OK")
</pallas_src>

<mosaic_0001>
module attributes {stable_mosaic.version = 11 : i64} {
  func.func @encoder_layer_kernel(%arg0: i32, %arg1: memref<1x8x32xbf16, #tpu.memory_space<vmem>>, %arg2: memref<32x96xbf16, #tpu.memory_space<vmem>>, %arg3: memref<1x96xf32, #tpu.memory_space<vmem>>, %arg4: memref<32x32xbf16, #tpu.memory_space<vmem>>, %arg5: memref<1x32xf32, #tpu.memory_space<vmem>>, %arg6: memref<32x64xbf16, #tpu.memory_space<vmem>>, %arg7: memref<1x64xf32, #tpu.memory_space<vmem>>, %arg8: memref<64x32xbf16, #tpu.memory_space<vmem>>, %arg9: memref<1x32xf32, #tpu.memory_space<vmem>>, %arg10: memref<1x32xf32, #tpu.memory_space<vmem>>, %arg11: memref<1x32xf32, #tpu.memory_space<vmem>>, %arg12: memref<1x32xf32, #tpu.memory_space<vmem>>, %arg13: memref<1x32xf32, #tpu.memory_space<vmem>>, %arg14: memref<1x8x32xf32, #tpu.memory_space<vmem>>) attributes {dimension_semantics = [#tpu.dimension_semantics<parallel>], iteration_bounds = array<i64: 2>, scalar_prefetch = 0 : i64, scratch_operands = 0 : i64, tpu.core_type = #tpu.core_type<tc>, window_params = [{transform_indices = @transform_0, window_bounds = array<i64: 1, 8, 32>}, {pipeline_mode = #tpu.pipeline_mode<synchronous>, transform_indices = @transform_1, window_bounds = array<i64: 32, 96>}, {pipeline_mode = #tpu.pipeline_mode<synchronous>, transform_indices = @transform_2, window_bounds = array<i64: 1, 96>}, {pipeline_mode = #tpu.pipeline_mode<synchronous>, transform_indices = @transform_3, window_bounds = array<i64: 32, 32>}, {pipeline_mode = #tpu.pipeline_mode<synchronous>, transform_indices = @transform_4, window_bounds = array<i64: 1, 32>}, {pipeline_mode = #tpu.pipeline_mode<synchronous>, transform_indices = @transform_5, window_bounds = array<i64: 32, 64>}, {pipeline_mode = #tpu.pipeline_mode<synchronous>, transform_indices = @transform_6, window_bounds = array<i64: 1, 64>}, {pipeline_mode = #tpu.pipeline_mode<synchronous>, transform_indices = @transform_7, window_bounds = array<i64: 64, 32>}, {pipeline_mode = #tpu.pipeline_mode<synchronous>, transform_indices = @transform_8, window_bounds = array<i64: 1, 32>}, {pipeline_mode = #tpu.pipeline_mode<synchronous>, transform_indices = @transform_9, window_bounds = array<i64: 1, 32>}, {pipeline_mode = #tpu.pipeline_mode<synchronous>, transform_indices = @transform_10, window_bounds = array<i64: 1, 32>}, {pipeline_mode = #tpu.pipeline_mode<synchronous>, transform_indices = @transform_11, window_bounds = array<i64: 1, 32>}, {pipeline_mode = #tpu.pipeline_mode<synchronous>, transform_indices = @transform_12, window_bounds = array<i64: 1, 32>}, {transform_indices = @transform_13, window_bounds = array<i64: 1, 8, 32>}]} {
    %c0 = arith.constant 0 : index
    %c0_0 = arith.constant 0 : index
    %c0_1 = arith.constant 0 : index
    %0 = vector.load %arg1[%c0, %c0_0, %c0_1] : memref<1x8x32xbf16, #tpu.memory_space<vmem>>, vector<1x8x32xbf16>
    %1 = vector.shape_cast %0 : vector<1x8x32xbf16> to vector<8x32xbf16>
    %2 = arith.extf %1 : vector<8x32xbf16> to vector<8x32xf32>
    %c0_2 = arith.constant 0 : index
    %c0_3 = arith.constant 0 : index
    %3 = vector.load %arg10[%c0_2, %c0_3] : memref<1x32xf32, #tpu.memory_space<vmem>>, vector<1x32xf32>
    %c0_4 = arith.constant 0 : index
    %c0_5 = arith.constant 0 : index
    %4 = vector.load %arg11[%c0_4, %c0_5] : memref<1x32xf32, #tpu.memory_space<vmem>>, vector<1x32xf32>
    %cst = arith.constant dense<0.000000e+00> : vector<8xf32>
    %5 = vector.multi_reduction <add>, %2, %cst [1] : vector<8x32xf32> to vector<8xf32>
    %6 = vector.shape_cast %5 : vector<8xf32> to vector<8x1xf32>
    %cst_6 = arith.constant 3.200000e+01 : f32
    %7 = vector.broadcast %cst_6 : f32 to vector<8x1xf32>
    %8 = arith.divf %6, %7 : vector<8x1xf32>
    %9 = vector.broadcast %8 : vector<8x1xf32> to vector<8x32xf32>
    %10 = arith.subf %2, %9 : vector<8x32xf32>
    %11 = arith.mulf %10, %10 : vector<8x32xf32>
    %cst_7 = arith.constant dense<0.000000e+00> : vector<8xf32>
    %12 = vector.multi_reduction <add>, %11, %cst_7 [1] : vector<8x32xf32> to vector<8xf32>
    %13 = vector.shape_cast %12 : vector<8xf32> to vector<8x1xf32>
    %cst_8 = arith.constant 3.200000e+01 : f32
    %14 = vector.broadcast %cst_8 : f32 to vector<8x1xf32>
    %15 = arith.divf %13, %14 : vector<8x1xf32>
    %16 = vector.broadcast %8 : vector<8x1xf32> to vector<8x32xf32>
    %17 = arith.subf %2, %16 : vector<8x32xf32>
    %cst_9 = arith.constant 9.99999974E-6 : f32
    %18 = vector.broadcast %cst_9 : f32 to vector<8x1xf32>
    %19 = arith.addf %15, %18 : vector<8x1xf32>
    %20 = math.rsqrt %19 : vector<8x1xf32>
    %21 = vector.broadcast %20 : vector<8x1xf32> to vector<8x32xf32>
    %22 = arith.mulf %17, %21 : vector<8x32xf32>
    %23 = vector.broadcast %3 : vector<1x32xf32> to vector<8x32xf32>
    %24 = arith.mulf %22, %23 : vector<8x32xf32>
    %25 = vector.broadcast %4 : vector<1x32xf32> to vector<8x32xf32>
    %26 = arith.addf %24, %25 : vector<8x32xf32>
    %27 = arith.truncf %26 : vector<8x32xf32> to vector<8x32xbf16>
    %c0_10 = arith.constant 0 : index
    %c0_11 = arith.constant 0 : index
    %28 = vector.load %arg2[%c0_10, %c0_11] : memref<32x96xbf16, #tpu.memory_space<vmem>>, vector<32x96xbf16>
    %cst_12 = arith.constant dense<0.000000e+00> : vector<8x96xf32>
    %29 = tpu.matmul %27, %28, %cst_12 {dimension_numbers = #tpu.dot_dimension_numbers<[1], [0], [0], [1], [0, 0, 1, 1], [], []>} : vector<8x32xbf16>, vector<32x96xbf16>, vector<8x96xf32> -> vector<8x96xf32>
    %c0_13 = arith.constant 0 : index
    %c0_14 = arith.constant 0 : index
    %30 = vector.load %arg3[%c0_13, %c0_14] : memref<1x96xf32, #tpu.memory_space<vmem>>, vector<1x96xf32>
    %31 = vector.extract_strided_slice %29 {offsets = [0, 0], sizes = [8, 32], strides = [1, 1]} : vector<8x96xf32> to vector<8x32xf32>
    %32 = vector.extract_strided_slice %30 {offsets = [0, 0], sizes = [1, 32], strides = [1, 1]} : vector<1x96xf32> to vector<1x32xf32>
    %33 = vector.broadcast %32 : vector<1x32xf32> to vector<8x32xf32>
    %34 = arith.addf %31, %33 : vector<8x32xf32>
    %cst_15 = arith.constant 0.353553385 : f32
    %35 = vector.broadcast %cst_15 : f32 to vector<8x32xf32>
    %36 = arith.mulf %34, %35 : vector<8x32xf32>
    %37 = arith.truncf %36 : vector<8x32xf32> to vector<8x32xbf16>
    %38 = vector.extract_strided_slice %29 {offsets = [0, 32], sizes = [8, 32], strides = [1, 1]} : vector<8x96xf32> to vector<8x32xf32>
    %39 = vector.extract_strided_slice %30 {offsets = [0, 32], sizes = [1, 32], strides = [1, 1]} : vector<1x96xf32> to vector<1x32xf32>
    %40 = vector.broadcast %39 : vector<1x32xf32> to vector<8x32xf32>
    %41 = arith.addf %38, %40 : vector<8x32xf32>
    %42 = arith.truncf %41 : vector<8x32xf32> to vector<8x32xbf16>
    %43 = vector.extract_strided_slice %29 {offsets = [0, 64], sizes = [8, 32], strides = [1, 1]} : vector<8x96xf32> to vector<8x32xf32>
    %44 = vector.extract_strided_slice %30 {offsets = [0, 64], sizes = [1, 32], strides = [1, 1]} : vector<1x96xf32> to vector<1x32xf32>
    %45 = vector.broadcast %44 : vector<1x32xf32> to vector<8x32xf32>
    %46 = arith.addf %43, %45 : vector<8x32xf32>
    %47 = arith.truncf %46 : vector<8x32xf32> to vector<8x32xbf16>
    %48 = vector.shape_cast %37 : vector<8x32xbf16> to vector<8x4x8xbf16>
    %49 = tpu.transpose %48, [1, 0, 2] : vector<8x4x8xbf16> -> vector<4x8x8xbf16>
    %50 = vector.shape_cast %42 : vector<8x32xbf16> to vector<8x4x8xbf16>
    %51 = tpu.transpose %50, [1, 2, 0] : vector<8x4x8xbf16> -> vector<4x8x8xbf16>
    %52 = vector.shape_cast %47 : vector<8x32xbf16> to vector<8x4x8xbf16>
    %53 = tpu.transpose %52, [1, 0, 2] : vector<8x4x8xbf16> -> vector<4x8x8xbf16>
    %cst_16 = arith.constant dense<0.000000e+00> : vector<4x8x8xf32>
    %54 = tpu.matmul %49, %51, %cst_16 {dimension_numbers = #tpu.dot_dimension_numbers<[2], [1], [1], [2], [0, 0, 0, 1, 1, 2], [0], [0]>} : vector<4x8x8xbf16>, vector<4x8x8xbf16>, vector<4x8x8xf32> -> vector<4x8x8xf32>
    %cst_17 = arith.constant dense<0xFF800000> : vector<4x8xf32>
    %55 = vector.multi_reduction <maximumf>, %54, %cst_17 [2] : vector<4x8x8xf32> to vector<4x8xf32>
    %56 = vector.shape_cast %55 : vector<4x8xf32> to vector<4x8x1xf32>
    %57 = vector.broadcast %56 : vector<4x8x1xf32> to vector<4x8x8xf32>
    %58 = arith.subf %54, %57 : vector<4x8x8xf32>
    %59 = math.exp %58 : vector<4x8x8xf32>
    %cst_18 = arith.constant dense<0.000000e+00> : vector<4x8xf32>
    %60 = vector.multi_reduction <add>, %59, %cst_18 [2] : vector<4x8x8xf32> to vector<4x8xf32>
    %61 = vector.shape_cast %60 : vector<4x8xf32> to vector<4x8x1xf32>
    %62 = tpu.reciprocal %61 {approx = true} : vector<4x8x1xf32> -> vector<4x8x1xf32>
    %63 = vector.broadcast %62 : vector<4x8x1xf32> to vector<4x8x8xf32>
    %64 = arith.mulf %59, %63 : vector<4x8x8xf32>
    %65 = arith.truncf %64 : vector<4x8x8xf32> to vector<4x8x8xbf16>
    %cst_19 = arith.constant dense<0.000000e+00> : vector<4x8x8xf32>
    %66 = tpu.matmul %65, %53, %cst_19 {dimension_numbers = #tpu.dot_dimension_numbers<[2], [1], [1], [2], [0, 0, 0, 1, 1, 2], [0], [0]>} : vector<4x8x8xbf16>, vector<4x8x8xbf16>, vector<4x8x8xf32> -> vector<4x8x8xf32>
    %67 = tpu.transpose %66, [1, 0, 2] : vector<4x8x8xf32> -> vector<8x4x8xf32>
    %68 = vector.shape_cast %67 : vector<8x4x8xf32> to vector<8x32xf32>
    %69 = arith.truncf %68 : vector<8x32xf32> to vector<8x32xbf16>
    %c0_20 = arith.constant 0 : index
    %c0_21 = arith.constant 0 : index
    %70 = vector.load %arg4[%c0_20, %c0_21] : memref<32x32xbf16, #tpu.memory_space<vmem>>, vector<32x32xbf16>
    %cst_22 = arith.constant dense<0.000000e+00> : vector<8x32xf32>
    %71 = tpu.matmul %69, %70, %cst_22 {dimension_numbers = #tpu.dot_dimension_numbers<[1], [0], [0], [1], [0, 0, 1, 1], [], []>} : vector<8x32xbf16>, vector<32x32xbf16>, vector<8x32xf32> -> vector<8x32xf32>
    %72 = arith.addf %2, %71 : vector<8x32xf32>
    %c0_23 = arith.constant 0 : index
    %c0_24 = arith.constant 0 : index
    %73 = vector.load %arg5[%c0_23, %c0_24] : memref<1x32xf32, #tpu.memory_space<vmem>>, vector<1x32xf32>
    %74 = vector.broadcast %73 : vector<1x32xf32> to vector<8x32xf32>
    %75 = arith.addf %72, %74 : vector<8x32xf32>
    %c0_25 = arith.constant 0 : index
    %c0_26 = arith.constant 0 : index
    %76 = vector.load %arg12[%c0_25, %c0_26] : memref<1x32xf32, #tpu.memory_space<vmem>>, vector<1x32xf32>
    %c0_27 = arith.constant 0 : index
    %c0_28 = arith.constant 0 : index
    %77 = vector.load %arg13[%c0_27, %c0_28] : memref<1x32xf32, #tpu.memory_space<vmem>>, vector<1x32xf32>
    %cst_29 = arith.constant dense<0.000000e+00> : vector<8xf32>
    %78 = vector.multi_reduction <add>, %75, %cst_29 [1] : vector<8x32xf32> to vector<8xf32>
    %79 = vector.shape_cast %78 : vector<8xf32> to vector<8x1xf32>
    %cst_30 = arith.constant 3.200000e+01 : f32
    %80 = vector.broadcast %cst_30 : f32 to vector<8x1xf32>
    %81 = arith.divf %79, %80 : vector<8x1xf32>
    %82 = vector.broadcast %81 : vector<8x1xf32> to vector<8x32xf32>
    %83 = arith.subf %75, %82 : vector<8x32xf32>
    %84 = arith.mulf %83, %83 : vector<8x32xf32>
    %cst_31 = arith.constant dense<0.000000e+00> : vector<8xf32>
    %85 = vector.multi_reduction <add>, %84, %cst_31 [1] : vector<8x32xf32> to vector<8xf32>
    %86 = vector.shape_cast %85 : vector<8xf32> to vector<8x1xf32>
    %cst_32 = arith.constant 3.200000e+01 : f32
    %87 = vector.broadcast %cst_32 : f32 to vector<8x1xf32>
    %88 = arith.divf %86, %87 : vector<8x1xf32>
    %89 = vector.broadcast %81 : vector<8x1xf32> to vector<8x32xf32>
    %90 = arith.subf %75, %89 : vector<8x32xf32>
    %cst_33 = arith.constant 9.99999974E-6 : f32
    %91 = vector.broadcast %cst_33 : f32 to vector<8x1xf32>
    %92 = arith.addf %88, %91 : vector<8x1xf32>
    %93 = math.rsqrt %92 : vector<8x1xf32>
    %94 = vector.broadcast %93 : vector<8x1xf32> to vector<8x32xf32>
    %95 = arith.mulf %90, %94 : vector<8x32xf32>
    %96 = vector.broadcast %76 : vector<1x32xf32> to vector<8x32xf32>
    %97 = arith.mulf %95, %96 : vector<8x32xf32>
    %98 = vector.broadcast %77 : vector<1x32xf32> to vector<8x32xf32>
    %99 = arith.addf %97, %98 : vector<8x32xf32>
    %100 = arith.truncf %99 : vector<8x32xf32> to vector<8x32xbf16>
    %cst_34 = arith.constant 0.000000e+00 : f32
    %101 = vector.broadcast %cst_34 : f32 to vector<8x32xf32>
    %c0_35 = arith.constant 0 : index
    %c0_36 = arith.constant 0 : index
    %102 = vector.load %arg6[%c0_35, %c0_36] : memref<32x64xbf16, #tpu.memory_space<vmem>>, vector<32x64xbf16>
    %cst_37 = arith.constant dense<0.000000e+00> : vector<8x64xf32>
    %103 = tpu.matmul %100, %102, %cst_37 {dimension_numbers = #tpu.dot_dimension_numbers<[1], [0], [0], [1], [0, 0, 1, 1], [], []>} : vector<8x32xbf16>, vector<32x64xbf16>, vector<8x64xf32> -> vector<8x64xf32>
    %c0_38 = arith.constant 0 : index
    %c0_39 = arith.constant 0 : index
    %104 = vector.load %arg7[%c0_38, %c0_39] : memref<1x64xf32, #tpu.memory_space<vmem>>, vector<1x64xf32>
    %105 = vector.broadcast %104 : vector<1x64xf32> to vector<8x64xf32>
    %106 = arith.addf %103, %105 : vector<8x64xf32>
    %cst_40 = arith.constant 0.000000e+00 : f32
    %107 = vector.broadcast %cst_40 : f32 to vector<8x64xf32>
    %108 = arith.maximumf %106, %107 : vector<8x64xf32>
    %109 = arith.truncf %108 : vector<8x64xf32> to vector<8x64xbf16>
    %c0_41 = arith.constant 0 : index
    %c0_42 = arith.constant 0 : index
    %110 = vector.load %arg8[%c0_41, %c0_42] : memref<64x32xbf16, #tpu.memory_space<vmem>>, vector<64x32xbf16>
    %cst_43 = arith.constant dense<0.000000e+00> : vector<8x32xf32>
    %111 = tpu.matmul %109, %110, %cst_43 {dimension_numbers = #tpu.dot_dimension_numbers<[1], [0], [0], [1], [0, 0, 1, 1], [], []>} : vector<8x64xbf16>, vector<64x32xbf16>, vector<8x32xf32> -> vector<8x32xf32>
    %112 = arith.addf %101, %111 : vector<8x32xf32>
    %113 = arith.addf %75, %112 : vector<8x32xf32>
    %c0_44 = arith.constant 0 : index
    %c0_45 = arith.constant 0 : index
    %114 = vector.load %arg9[%c0_44, %c0_45] : memref<1x32xf32, #tpu.memory_space<vmem>>, vector<1x32xf32>
    %115 = vector.broadcast %114 : vector<1x32xf32> to vector<8x32xf32>
    %116 = arith.addf %113, %115 : vector<8x32xf32>
    %c0_46 = arith.constant 0 : index
    %c0_47 = arith.constant 0 : index
    %c0_48 = arith.constant 0 : index
    %117 = vector.load %arg14[%c0_46, %c0_47, %c0_48] : memref<1x8x32xf32, #tpu.memory_space<vmem>>, vector<1x8x32xf32>
    %118 = vector.shape_cast %117 : vector<1x8x32xf32> to vector<8x32xf32>
    %119 = vector.shape_cast %116 : vector<8x32xf32> to vector<1x8x32xf32>
    tpu.vector_store %arg14[%c0_46, %c0_47, %c0_48], %119 {strides = array<i32>} : memref<1x8x32xf32, #tpu.memory_space<vmem>>, vector<1x8x32xf32>,
    return
  }
  func.func @transform_0(%arg0: i32) -> (i32, i32, i32) {
    %c0_i32 = arith.constant 0 : i32
    %c0_i32_0 = arith.constant 0 : i32
    %c0_i32_1 = arith.constant 0 : i32
    return %arg0, %c0_i32, %c0_i32_0 : i32, i32, i32
  }
  func.func @transform_1(%arg0: i32) -> (i32, i32) {
    %c0_i32 = arith.constant 0 : i32
    %c0_i32_0 = arith.constant 0 : i32
    %c0_i32_1 = arith.constant 0 : i32
    return %c0_i32, %c0_i32_0 : i32, i32
  }
  func.func @transform_2(%arg0: i32) -> (i32, i32) {
    %c0_i32 = arith.constant 0 : i32
    %c0_i32_0 = arith.constant 0 : i32
    %c0_i32_1 = arith.constant 0 : i32
    return %c0_i32, %c0_i32_0 : i32, i32
  }
  func.func @transform_3(%arg0: i32) -> (i32, i32) {
    %c0_i32 = arith.constant 0 : i32
    %c0_i32_0 = arith.constant 0 : i32
    %c0_i32_1 = arith.constant 0 : i32
    return %c0_i32, %c0_i32_0 : i32, i32
  }
  func.func @transform_4(%arg0: i32) -> (i32, i32) {
    %c0_i32 = arith.constant 0 : i32
    %c0_i32_0 = arith.constant 0 : i32
    %c0_i32_1 = arith.constant 0 : i32
    return %c0_i32, %c0_i32_0 : i32, i32
  }
  func.func @transform_5(%arg0: i32) -> (i32, i32) {
    %c0_i32 = arith.constant 0 : i32
    %c0_i32_0 = arith.constant 0 : i32
    %c0_i32_1 = arith.constant 0 : i32
    return %c0_i32, %c0_i32_0 : i32, i32
  }
  func.func @transform_6(%arg0: i32) -> (i32, i32) {
    %c0_i32 = arith.constant 0 : i32
    %c0_i32_0 = arith.constant 0 : i32
    %c0_i32_1 = arith.constant 0 : i32
    return %c0_i32, %c0_i32_0 : i32, i32
  }
  func.func @transform_7(%arg0: i32) -> (i32, i32) {
    %c0_i32 = arith.constant 0 : i32
    %c0_i32_0 = arith.constant 0 : i32
    %c0_i32_1 = arith.constant 0 : i32
    return %c0_i32, %c0_i32_0 : i32, i32
  }
  func.func @transform_8(%arg0: i32) -> (i32, i32) {
    %c0_i32 = arith.constant 0 : i32
    %c0_i32_0 = arith.constant 0 : i32
    %c0_i32_1 = arith.constant 0 : i32
    return %c0_i32, %c0_i32_0 : i32, i32
  }
  func.func @transform_9(%arg0: i32) -> (i32, i32) {
    %c0_i32 = arith.constant 0 : i32
    %c0_i32_0 = arith.constant 0 : i32
    %c0_i32_1 = arith.constant 0 : i32
    return %c0_i32, %c0_i32_0 : i32, i32
  }
  func.func @transform_10(%arg0: i32) -> (i32, i32) {
    %c0_i32 = arith.constant 0 : i32
    %c0_i32_0 = arith.constant 0 : i32
    %c0_i32_1 = arith.constant 0 : i32
    return %c0_i32, %c0_i32_0 : i32, i32
  }
  func.func @transform_11(%arg0: i32) -> (i32, i32) {
    %c0_i32 = arith.constant 0 : i32
    %c0_i32_0 = arith.constant 0 : i32
    %c0_i32_1 = arith.constant 0 : i32
    return %c0_i32, %c0_i32_0 : i32, i32
  }
  func.func @transform_12(%arg0: i32) -> (i32, i32) {
    %c0_i32 = arith.constant 0 : i32
    %c0_i32_0 = arith.constant 0 : i32
    %c0_i32_1 = arith.constant 0 : i32
    return %c0_i32, %c0_i32_0 : i32, i32
  }
  func.func @transform_13(%arg0: i32) -> (i32, i32, i32) {
    %c0_i32 = arith.constant 0 : i32
    %c0_i32_0 = arith.constant 0 : i32
    %c0_i32_1 = arith.constant 0 : i32
    return %arg0, %c0_i32, %c0_i32_0 : i32, i32, i32
  }
}

</mosaic_0001>

<llo_original>
// kernel: tpu_custom_call.1
$region0: #{tpu_custom_call.1}
  #allocation0 [shape = 'u32[]', space=smem, size = 0x4, offset = 0x4, fixed_abs, tag = 'smem constant byte address 0x4 - core index']
  #allocation1 [shape = 'u32[72,128]{1,0:T(1,128)}', space=vmem, size = 0x9000, scoped, tag = 'internal scratch']
  %s0 = inlined_call_operand.hbm [shape: bf16[2,8,32], index: 0, kind: input, shape index: {}]
  %s1 = inlined_call_operand.vmem [shape: bf16[32,96], index: 1, kind: input, shape index: {}]
  %s2 = inlined_call_operand.vmem [shape: f32[1,96], index: 2, kind: input, shape index: {}]
  %s3 = inlined_call_operand.vmem [shape: bf16[32,32], index: 3, kind: input, shape index: {}]
  %s4 = inlined_call_operand.vmem [shape: f32[1,32], index: 4, kind: input, shape index: {}]
  %s5 = inlined_call_operand.vmem [shape: bf16[32,64], index: 5, kind: input, shape index: {}]
  %s6 = inlined_call_operand.vmem [shape: f32[1,64], index: 6, kind: input, shape index: {}]
  %s7 = inlined_call_operand.vmem [shape: bf16[64,32], index: 7, kind: input, shape index: {}]
  %s8 = inlined_call_operand.vmem [shape: f32[1,32], index: 8, kind: input, shape index: {}]
  %s9 = inlined_call_operand.vmem [shape: f32[1,32], index: 9, kind: input, shape index: {}]
  %s10 = inlined_call_operand.vmem [shape: f32[1,32], index: 10, kind: input, shape index: {}]
  %s11 = inlined_call_operand.vmem [shape: f32[1,32], index: 11, kind: input, shape index: {}]
  %s12 = inlined_call_operand.vmem [shape: f32[1,32], index: 12, kind: input, shape index: {}]
  %s13 = inlined_call_operand.hbm [shape: f32[2,8,32], index: 13, kind: output, shape index: {}]
  %s14 = sld [smem:[#allocation0]]
  $region89: #{tpu_custom_call.1} parent=0
    _
  %s16 = ssub.s32 1, %s14
  %s17 = scalar_select 0, %s16, %s14
  $region1: #{tpu_custom_call.1} parent=0
    #allocation2 [shape = 'u8[4096]{0}', space=vmem, size = 0x1000, scoped, tag = 'input window, operand 0']
    #allocation3 [shape = 's32[2]{0}', space=sflag, size = 0x8, scoped, tag = 'scoped memory for tpu_custom_call.1']
    #allocation4 [shape = 's32[2]{0}', space=sflag, size = 0x8, scoped, tag = 'scoped memory for tpu_custom_call.1']
    #allocation5 [shape = 'u8[8192]{0}', space=vmem, size = 0x2000, scoped, tag = 'output window, operand 0']
    %18 = vsyncpa [#allocation3], 0
    %s19 = scalar_lea.sflag [#allocation3], 1
    %20 = vsyncpa %s19, 0
    %21 = vsyncpa [#allocation4], 0
    %s22 = scalar_lea.sflag [#allocation4], 1
    %23 = vsyncpa %s22, 0
    loop: start=0, step=1, limit=4
    $region2: #{tpu_custom_call.1} parent=1 // loop_pre_header
      _
    $region3: #{tpu_custom_call.1} parent=1 // loop_header
      %s25 = sphi 0, %s29
      %p26 = scmp.ge.s32.totalorder %s25, 4
      %s35 = sphi 0, %s37
      %s38 = sphi 0, %s35
      %s39 = sphi 0, %s38
      %s55 = sphi 0, %s39
      %s59 = sphi 0, %s59
      %s61 = sphi 0, %s59
      %s62 = sphi 0, %s61
      %s76 = sphi 0, %s62
      %s80 = sphi 0, %s80
      %s82 = sphi 0, %s80
      %s83 = sphi 0, %s82
      %s97 = sphi 0, %s83
      %s101 = sphi 0, %s101
      %s103 = sphi 0, %s101
      %s104 = sphi 0, %s103
      %s118 = sphi 0, %s104
      %s122 = sphi 0, %s122
      %s124 = sphi 0, %s122
      %s125 = sphi 0, %s124
      %s139 = sphi 0, %s125
      %s143 = sphi 0, %s143
      %s145 = sphi 0, %s143
      %s146 = sphi 0, %s145
      %s160 = sphi 0, %s146
      %s164 = sphi 0, %s164
      %s166 = sphi 0, %s164
      %s167 = sphi 0, %s166
      %s181 = sphi 0, %s167
      %s185 = sphi 0, %s185
      %s187 = sphi 0, %s185
      %s188 = sphi 0, %s187
      %s202 = sphi 0, %s188
      %s206 = sphi 0, %s206
      %s208 = sphi 0, %s206
      %s209 = sphi 0, %s208
      %s223 = sphi 0, %s209
      %s227 = sphi 0, %s227
      %s229 = sphi 0, %s227
      %s230 = sphi 0, %s229
      %s244 = sphi 0, %s230
      %s248 = sphi 0, %s248
      %s250 = sphi 0, %s248
      %s251 = sphi 0, %s250
      %s265 = sphi 0, %s251
      %s269 = sphi 0, %s269
      %s271 = sphi 0, %s269
      %s272 = sphi 0, %s271
      %s286 = sphi 0, %s272
      %s290 = sphi 0, %s290
      %s292 = sphi 0, %s290
      %s293 = sphi 0, %s292
      %s307 = sphi 0, %s293
      %s313 = sphi 0, %s315
      %s316 = sphi 0, %s313
      %s317 = sphi 0, %s316
      %s333 = sphi 0, %s317
    $region4: #{tpu_custom_call.1} parent=1 // loop_header_branch
      %28 = sbr.rel (%p26) target = $region8
    $region5: #{tpu_custom_call.1} parent=1 // loop_body
      %s30 = ssub.s32 %s25, 1
      %s31 = ssub.s32 %s25, 2
      %s32 = sadd.s32 %s25, 1
      %s33 = ssub.s32 %s25, %s32
      %p34 = scmp.eq.s32.totalorder %s33, 0
      %s36 = sadd.s32 %s35, 1
      %s37 = scalar_select %p34, %s35, %s36
      %p40 = pneg %p34
      %p41 = scmp.eq.s32.totalorder %s25, 1
      %p42 = por %p40, %p41
      %p43 = scmp.ne.s32.totalorder %s35, %s38
      %p44 = scmp.eq.s32.totalorder %s25, 0
      %p45 = por %p43, %p44
      %p46 = scmp.ne.s32.totalorder %s35, %s38
      %p47 = scmp.eq.s32.totalorder %s30, 1
      %p48 = por %p46, %p47
      %p49 = scmp.ne.s32.totalorder %s38, %s39
      %p50 = scmp.eq.s32.totalorder %s30, 0
      %p51 = por %p49, %p50
      %p52 = scmp.ne.s32.totalorder %s38, %s39
      %p53 = scmp.eq.s32.totalorder %s31, 1
      %p54 = por %p52, %p53
      %p56 = scmp.ne.s32.totalorder %s39, %s55
      %p57 = scmp.eq.s32.totalorder %s31, 0
      %p58 = por %p56, %p57
      %s60 = sadd.s32 %s59, 1
      %p63 = scmp.eq.s32.totalorder %s25, 1
      %p64 = scmp.ne.s32.totalorder %s59, %s61
      %p65 = scmp.eq.s32.totalorder %s25, 0
      %p66 = por %p64, %p65
      %p67 = scmp.ne.s32.totalorder %s59, %s61
      %p68 = scmp.eq.s32.totalorder %s30, 1
      %p69 = por %p67, %p68
      %p70 = scmp.ne.s32.totalorder %s61, %s62
      %p71 = scmp.eq.s32.totalorder %s30, 0
      %p72 = por %p70, %p71
      %p73 = scmp.ne.s32.totalorder %s61, %s62
      %p74 = scmp.eq.s32.totalorder %s31, 1
      %p75 = por %p73, %p74
      %p77 = scmp.ne.s32.totalorder %s62, %s76
      %p78 = scmp.eq.s32.totalorder %s31, 0
      %p79 = por %p77, %p78
      %s81 = sadd.s32 %s80, 1
      %p84 = scmp.eq.s32.totalorder %s25, 1
      %p85 = scmp.ne.s32.totalorder %s80, %s82
      %p86 = scmp.eq.s32.totalorder %s25, 0
      %p87 = por %p85, %p86
      %p88 = scmp.ne.s32.totalorder %s80, %s82
      %p89 = scmp.eq.s32.totalorder %s30, 1
      %p90 = por %p88, %p89
      %p91 = scmp.ne.s32.totalorder %s82, %s83
      %p92 = scmp.eq.s32.totalorder %s30, 0
      %p93 = por %p91, %p92
      %p94 = scmp.ne.s32.totalorder %s82, %s83
      %p95 = scmp.eq.s32.totalorder %s31, 1
      %p96 = por %p94, %p95
      %p98 = scmp.ne.s32.totalorder %s83, %s97
      %p99 = scmp.eq.s32.totalorder %s31, 0
      %p100 = por %p98, %p99
      %s102 = sadd.s32 %s101, 1
      %p105 = scmp.eq.s32.totalorder %s25, 1
      %p106 = scmp.ne.s32.totalorder %s101, %s103
      %p107 = scmp.eq.s32.totalorder %s25, 0
      %p108 = por %p106, %p107
      %p109 = scmp.ne.s32.totalorder %s101, %s103
      %p110 = scmp.eq.s32.totalorder %s30, 1
      %p111 = por %p109, %p110
      %p112 = scmp.ne.s32.totalorder %s103, %s104
      %p113 = scmp.eq.s32.totalorder %s30, 0
      %p114 = por %p112, %p113
      %p115 = scmp.ne.s32.totalorder %s103, %s104
      %p116 = scmp.eq.s32.totalorder %s31, 1
      %p117 = por %p115, %p116
      %p119 = scmp.ne.s32.totalorder %s104, %s118
      %p120 = scmp.eq.s32.totalorder %s31, 0
      %p121 = por %p119, %p120
      %s123 = sadd.s32 %s122, 1
      %p126 = scmp.eq.s32.totalorder %s25, 1
      %p127 = scmp.ne.s32.totalorder %s122, %s124
      %p128 = scmp.eq.s32.totalorder %s25, 0
      %p129 = por %p127, %p128
      %p130 = scmp.ne.s32.totalorder %s122, %s124
      %p131 = scmp.eq.s32.totalorder %s30, 1
      %p132 = por %p130, %p131
      %p133 = scmp.ne.s32.totalorder %s124, %s125
      %p134 = scmp.eq.s32.totalorder %s30, 0
      %p135 = por %p133, %p134
      %p136 = scmp.ne.s32.totalorder %s124, %s125
      %p137 = scmp.eq.s32.totalorder %s31, 1
      %p138 = por %p136, %p137
      %p140 = scmp.ne.s32.totalorder %s125, %s139
      %p141 = scmp.eq.s32.totalorder %s31, 0
      %p142 = por %p140, %p141
      %s144 = sadd.s32 %s143, 1
      %p147 = scmp.eq.s32.totalorder %s25, 1
      %p148 = scmp.ne.s32.totalorder %s143, %s145
      %p149 = scmp.eq.s32.totalorder %s25, 0
      %p150 = por %p148, %p149
      %p151 = scmp.ne.s32.totalorder %s143, %s145
      %p152 = scmp.eq.s32.totalorder %s30, 1
      %p153 = por %p151, %p152
      %p154 = scmp.ne.s32.totalorder %s145, %s146
      %p155 = scmp.eq.s32.totalorder %s30, 0
      %p156 = por %p154, %p155
      %p157 = scmp.ne.s32.totalorder %s145, %s146
      %p158 = scmp.eq.s32.totalorder %s31, 1
      %p159 = por %p157, %p158
      %p161 = scmp.ne.s32.totalorder %s146, %s160
      %p162 = scmp.eq.s32.totalorder %s31, 0
      %p163 = por %p161, %p162
      %s165 = sadd.s32 %s164, 1
      %p168 = scmp.eq.s32.totalorder %s25, 1
      %p169 = scmp.ne.s32.totalorder %s164, %s166
      %p170 = scmp.eq.s32.totalorder %s25, 0
      %p171 = por %p169, %p170
      %p172 = scmp.ne.s32.totalorder %s164, %s166
      %p173 = scmp.eq.s32.totalorder %s30, 1
      %p174 = por %p172, %p173
      %p175 = scmp.ne.s32.totalorder %s166, %s167
      %p176 = scmp.eq.s32.totalorder %s30, 0
      %p177 = por %p175, %p176
      %p178 = scmp.ne.s32.totalorder %s166, %s167
      %p179 = scmp.eq.s32.totalorder %s31, 1
      %p180 = por %p178, %p179
      %p182 = scmp.ne.s32.totalorder %s167, %s181
      %p183 = scmp.eq.s32.totalorder %s31, 0
      %p184 = por %p182, %p183
      %s186 = sadd.s32 %s185, 1
      %p189 = scmp.eq.s32.totalorder %s25, 1
      %p190 = scmp.ne.s32.totalorder %s185, %s187
      %p191 = scmp.eq.s32.totalorder %s25, 0
      %p192 = por %p190, %p191
      %p193 = scmp.ne.s32.totalorder %s185, %s187
      %p194 = scmp.eq.s32.totalorder %s30, 1
      %p195 = por %p193, %p194
      %p196 = scmp.ne.s32.totalorder %s187, %s188
      %p197 = scmp.eq.s32.totalorder %s30, 0
      %p198 = por %p196, %p197
      %p199 = scmp.ne.s32.totalorder %s187, %s188
      %p200 = scmp.eq.s32.totalorder %s31, 1
      %p201 = por %p199, %p200
      %p203 = scmp.ne.s32.totalorder %s188, %s202
      %p204 = scmp.eq.s32.totalorder %s31, 0
      %p205 = por %p203, %p204
      %s207 = sadd.s32 %s206, 1
      %p210 = scmp.eq.s32.totalorder %s25, 1
      %p211 = scmp.ne.s32.totalorder %s206, %s208
      %p212 = scmp.eq.s32.totalorder %s25, 0
      %p213 = por %p211, %p212
      %p214 = scmp.ne.s32.totalorder %s206, %s208
      %p215 = scmp.eq.s32.totalorder %s30, 1
      %p216 = por %p214, %p215
      %p217 = scmp.ne.s32.totalorder %s208, %s209
      %p218 = scmp.eq.s32.totalorder %s30, 0
      %p219 = por %p217, %p218
      %p220 = scmp.ne.s32.totalorder %s208, %s209
      %p221 = scmp.eq.s32.totalorder %s31, 1
      %p222 = por %p220, %p221
      %p224 = scmp.ne.s32.totalorder %s209, %s223
      %p225 = scmp.eq.s32.totalorder %s31, 0
      %p226 = por %p224, %p225
      %s228 = sadd.s32 %s227, 1
      %p231 = scmp.eq.s32.totalorder %s25, 1
      %p232 = scmp.ne.s32.totalorder %s227, %s229
      %p233 = scmp.eq.s32.totalorder %s25, 0
      %p234 = por %p232, %p233
      %p235 = scmp.ne.s32.totalorder %s227, %s229
      %p236 = scmp.eq.s32.totalorder %s30, 1
      %p237 = por %p235, %p236
      %p238 = scmp.ne.s32.totalorder %s229, %s230
      %p239 = scmp.eq.s32.totalorder %s30, 0
      %p240 = por %p238, %p239
      %p241 = scmp.ne.s32.totalorder %s229, %s230
      %p242 = scmp.eq.s32.totalorder %s31, 1
      %p243 = por %p241, %p242
      %p245 = scmp.ne.s32.totalorder %s230, %s244
      %p246 = scmp.eq.s32.totalorder %s31, 0
      %p247 = por %p245, %p246
      %s249 = sadd.s32 %s248, 1
      %p252 = scmp.eq.s32.totalorder %s25, 1
      %p253 = scmp.ne.s32.totalorder %s248, %s250
      %p254 = scmp.eq.s32.totalorder %s25, 0
      %p255 = por %p253, %p254
      %p256 = scmp.ne.s32.totalorder %s248, %s250
      %p257 = scmp.eq.s32.totalorder %s30, 1
      %p258 = por %p256, %p257
      %p259 = scmp.ne.s32.totalorder %s250, %s251
      %p260 = scmp.eq.s32.totalorder %s30, 0
      %p261 = por %p259, %p260
      %p262 = scmp.ne.s32.totalorder %s250, %s251
      %p263 = scmp.eq.s32.totalorder %s31, 1
      %p264 = por %p262, %p263
      %p266 = scmp.ne.s32.totalorder %s251, %s265
      %p267 = scmp.eq.s32.totalorder %s31, 0
      %p268 = por %p266, %p267
      %s270 = sadd.s32 %s269, 1
      %p273 = scmp.eq.s32.totalorder %s25, 1
      %p274 = scmp.ne.s32.totalorder %s269, %s271
      %p275 = scmp.eq.s32.totalorder %s25, 0
      %p276 = por %p274, %p275
      %p277 = scmp.ne.s32.totalorder %s269, %s271
      %p278 = scmp.eq.s32.totalorder %s30, 1
      %p279 = por %p277, %p278
      %p280 = scmp.ne.s32.totalorder %s271, %s272
      %p281 = scmp.eq.s32.totalorder %s30, 0
      %p282 = por %p280, %p281
      %p283 = scmp.ne.s32.totalorder %s271, %s272
      %p284 = scmp.eq.s32.totalorder %s31, 1
      %p285 = por %p283, %p284
      %p287 = scmp.ne.s32.totalorder %s272, %s286
      %p288 = scmp.eq.s32.totalorder %s31, 0
      %p289 = por %p287, %p288
      %s291 = sadd.s32 %s290, 1
      %p294 = scmp.eq.s32.totalorder %s25, 1
      %p295 = scmp.ne.s32.totalorder %s290, %s292
      %p296 = scmp.eq.s32.totalorder %s25, 0
      %p297 = por %p295, %p296
      %p298 = scmp.ne.s32.totalorder %s290, %s292
      %p299 = scmp.eq.s32.totalorder %s30, 1
      %p300 = por %p298, %p299
      %p301 = scmp.ne.s32.totalorder %s292, %s293
      %p302 = scmp.eq.s32.totalorder %s30, 0
      %p303 = por %p301, %p302
      %p304 = scmp.ne.s32.totalorder %s292, %s293
      %p305 = scmp.eq.s32.totalorder %s31, 1
      %p306 = por %p304, %p305
      %p308 = scmp.ne.s32.totalorder %s293, %s307
      %p309 = scmp.eq.s32.totalorder %s31, 0
      %p310 = por %p308, %p309
      %s311 = ssub.s32 %s25, %s32
      %p312 = scmp.eq.s32.totalorder %s311, 0
      %s314 = sadd.s32 %s313, 1
      %s315 = scalar_select %p312, %s313, %s314
      %p318 = pneg %p312
      %p319 = scmp.eq.s32.totalorder %s25, 1
      %p320 = por %p318, %p319
      %p321 = scmp.ne.s32.totalorder %s313, %s316
      %p322 = scmp.eq.s32.totalorder %s25, 0
      %p323 = por %p321, %p322
      %p324 = scmp.ne.s32.totalorder %s313, %s316
      %p325 = scmp.eq.s32.totalorder %s30, 1
      %p326 = por %p324, %p325
      %p327 = scmp.ne.s32.totalorder %s316, %s317
      %p328 = scmp.eq.s32.totalorder %s30, 0
      %p329 = por %p327, %p328
      %p330 = scmp.ne.s32.totalorder %s316, %s317
      %p331 = scmp.eq.s32.totalorder %s31, 1
      %p332 = por %p330, %p331
      %p334 = scmp.ne.s32.totalorder %s317, %s333
      %p335 = scmp.eq.s32.totalorder %s31, 0
      %p336 = por %p334, %p335
      %p337 = scmp.le.s32.totalorder 1, %s25
      %p338 = scmp.lt.s32.totalorder %s25, 3
      %p339 = pnand %p337, %p338
      %p340 = pneg %p339
      // Predicated region
      $region9: #{tpu_custom_call.1} parent=5 // pred_check
        _
      $region10: #{tpu_custom_call.1} parent=5 // pred_check_branch
        %342 = sbr.rel (%p339) target = $region12
      $region11: #{tpu_custom_call.1} parent=5 // pred_region
        %s343 = ssub.s32 %s25, 1
        // Predicated region
        $region13: #{tpu_custom_call.1} parent=11 // pred_check
          %p344 = pneg %p72
        $region14: #{tpu_custom_call.1} parent=11 // pred_check_branch
          %346 = sbr.rel (%p344) target = $region16
        $region15: #{tpu_custom_call.1} parent=11 // pred_region
          _
        $region16: #{tpu_custom_call.1} parent=11 // pred_fallthru
          _
        // Predicated region
        $region17: #{tpu_custom_call.1} parent=11 // pred_check
          %p347 = pneg %p93
        $region18: #{tpu_custom_call.1} parent=11 // pred_check_branch
          %349 = sbr.rel (%p347) target = $region20
        $region19: #{tpu_custom_call.1} parent=11 // pred_region
          _
        $region20: #{tpu_custom_call.1} parent=11 // pred_fallthru
          _
        // Predicated region
        $region21: #{tpu_custom_call.1} parent=11 // pred_check
          %p350 = pneg %p114
        $region22: #{tpu_custom_call.1} parent=11 // pred_check_branch
          %352 = sbr.rel (%p350) target = $region24
        $region23: #{tpu_custom_call.1} parent=11 // pred_region
          _
        $region24: #{tpu_custom_call.1} parent=11 // pred_fallthru
          _
        // Predicated region
        $region25: #{tpu_custom_call.1} parent=11 // pred_check
          %p353 = pneg %p135
        $region26: #{tpu_custom_call.1} parent=11 // pred_check_branch
          %355 = sbr.rel (%p353) target = $region28
        $region27: #{tpu_custom_call.1} parent=11 // pred_region
          _
        $region28: #{tpu_custom_call.1} parent=11 // pred_fallthru
          _
        // Predicated region
        $region29: #{tpu_custom_call.1} parent=11 // pred_check
          %p356 = pneg %p156
        $region30: #{tpu_custom_call.1} parent=11 // pred_check_branch
          %358 = sbr.rel (%p356) target = $region32
        $region31: #{tpu_custom_call.1} parent=11 // pred_region
          _
        $region32: #{tpu_custom_call.1} parent=11 // pred_fallthru
          _
        // Predicated region
        $region33: #{tpu_custom_call.1} parent=11 // pred_check
          %p359 = pneg %p177
        $region34: #{tpu_custom_call.1} parent=11 // pred_check_branch
          %361 = sbr.rel (%p359) target = $region36
        $region35: #{tpu_custom_call.1} parent=11 // pred_region
          _
        $region36: #{tpu_custom_call.1} parent=11 // pred_fallthru
          _
        // Predicated region
        $region37: #{tpu_custom_call.1} parent=11 // pred_check
          %p362 = pneg %p198
        $region38: #{tpu_custom_call.1} parent=11 // pred_check_branch
          %364 = sbr.rel (%p362) target = $region40
        $region39: #{tpu_custom_call.1} parent=11 // pred_region
          _
        $region40: #{tpu_custom_call.1} parent=11 // pred_fallthru
          _
        // Predicated region
        $region41: #{tpu_custom_call.1} parent=11 // pred_check
          %p365 = pneg %p219
        $region42: #{tpu_custom_call.1} parent=11 // pred_check_branch
          %367 = sbr.rel (%p365) target = $region44
        $region43: #{tpu_custom_call.1} parent=11 // pred_region
          _
        $region44: #{tpu_custom_call.1} parent=11 // pred_fallthru
          _
        // Predicated region
        $region45: #{tpu_custom_call.1} parent=11 // pred_check
          %p368 = pneg %p240
        $region46: #{tpu_custom_call.1} parent=11 // pred_check_branch
          %370 = sbr.rel (%p368) target = $region48
        $region47: #{tpu_custom_call.1} parent=11 // pred_region
          _
        $region48: #{tpu_custom_call.1} parent=11 // pred_fallthru
          _
        // Predicated region
        $region49: #{tpu_custom_call.1} parent=11 // pred_check
          %p371 = pneg %p261
        $region50: #{tpu_custom_call.1} parent=11 // pred_check_branch
          %373 = sbr.rel (%p371) target = $region52
        $region51: #{tpu_custom_call.1} parent=11 // pred_region
          _
        $region52: #{tpu_custom_call.1} parent=11 // pred_fallthru
          _
        // Predicated region
        $region53: #{tpu_custom_call.1} parent=11 // pred_check
          %p374 = pneg %p282
        $region54: #{tpu_custom_call.1} parent=11 // pred_check_branch
          %376 = sbr.rel (%p374) target = $region56
        $region55: #{tpu_custom_call.1} parent=11 // pred_region
          _
        $region56: #{tpu_custom_call.1} parent=11 // pred_fallthru
          _
        // Predicated region
        $region57: #{tpu_custom_call.1} parent=11 // pred_check
          %p377 = pneg %p303
        $region58: #{tpu_custom_call.1} parent=11 // pred_check_branch
          %379 = sbr.rel (%p377) target = $region60
        $region59: #{tpu_custom_call.1} parent=11 // pred_region
          _
        $region60: #{tpu_custom_call.1} parent=11 // pred_fallthru
          _
      $region12: #{tpu_custom_call.1} parent=5 // pred_fallthru
        _
      %p380 = scmp.lt.s32.totalorder %s25, 2
      // Predicated region
      $region61: #{tpu_custom_call.1} parent=5 // pred_check
        %p381 = pneg %p380
      $region62: #{tpu_custom_call.1} parent=5 // pred_check_branch
        %383 = sbr.rel (%p381) target = $region64
      $region63: #{tpu_custom_call.1} parent=5 // pred_region
        // Predicated region
        $region65: #{tpu_custom_call.1} parent=63 // pred_check
          %p384 = pneg %p45
        $region66: #{tpu_custom_call.1} parent=63 // pred_check_branch
          %386 = sbr.rel (%p384) target = $region68
        $region67: #{tpu_custom_call.1} parent=63 // pred_region
          %s387 = sand.u32 %s35, 1
          %s388 = scalar_lea.sflag [#allocation3], %s387
          %s389 = sand.u32 %s35, 1
          %s390 = smul.addr %s389, 4
          %s391 = scalar_lea.vmem [#allocation2], %s390
          %393 = vsyncadd %s388, 0
          %s394 = smul.addr %s25, 4
          %s395 = scalar_lea.hbm %s0, %s394
          %s397 = sshll.u32 %s395, 4
          %s398 = int_to_ptr.hbm [resolvable:$true] %s397
          %s399 = sshll.u32 %s391, 4
          %s400 = int_to_ptr.vmem [resolvable:$true] %s399
          %402 = dma.hbm_to_vmem [thread:$0]  %s398, 64, %s400, %s388
        $region68: #{tpu_custom_call.1} parent=63 // pred_fallthru
          _
      $region64: #{tpu_custom_call.1} parent=5 // pred_fallthru
        _
      %p403 = scmp.le.s32.totalorder 1, %s25
      %p404 = scmp.lt.s32.totalorder %s25, 3
      %p405 = pnand %p403, %p404
      %p406 = pneg %p405
      // Predicated region
      $region69: #{tpu_custom_call.1} parent=5 // pred_check
        _
      $region70: #{tpu_custom_call.1} parent=5 // pred_check_branch
        %408 = sbr.rel (%p405) target = $region72
      $region71: #{tpu_custom_call.1} parent=5 // pred_region
        %s409 = ssub.s32 %s25, 1
        %s410 = sand.u32 %s38, 1
        %s411 = scalar_lea.sflag [#allocation3], %s410
        %s412 = sand.u32 %s38, 1
        %s413 = smul.addr %s412, 4
        %s414 = scalar_lea.vmem [#allocation2], %s413
        // Predicated region
        $region73: #{tpu_custom_call.1} parent=71 // pred_check
          %p415 = pneg %p51
        $region74: #{tpu_custom_call.1} parent=71 // pred_check_branch
          %417 = sbr.rel (%p415) target = $region76
        $region75: #{tpu_custom_call.1} parent=71 // pred_region
          %419 = dma.done %s411, 64
        $region76: #{tpu_custom_call.1} parent=71 // pred_fallthru
          _
        %s420 = sand.u32 %s38, 1
        %s421 = scalar_lea.sflag [#allocation3], %s420
        %s422 = sand.u32 %s38, 1
        %s423 = smul.addr %s422, 4
        %s424 = scalar_lea.vmem [#allocation2], %s423
        %p425 = pneg %p51
        %p426 = pneg %p48
        %p427 = pneg %p72
        %p428 = pneg %p69
        %p429 = pneg %p93
        %p430 = pneg %p90
        %p431 = pneg %p114
        %p432 = pneg %p111
        %p433 = pneg %p135
        %p434 = pneg %p132
        %p435 = pneg %p156
        %p436 = pneg %p153
        %p437 = pneg %p177
        %p438 = pneg %p174
        %p439 = pneg %p198
        %p440 = pneg %p195
        %p441 = pneg %p219
        %p442 = pneg %p216
        %p443 = pneg %p240
        %p444 = pneg %p237
        %p445 = pneg %p261
        %p446 = pneg %p258
        %p447 = pneg %p282
        %p448 = pneg %p279
        %p449 = pneg %p303
        %p450 = pneg %p300
        %p451 = pneg %p329
        %p452 = pneg %p326
        %s453 = sand.u32 %s316, 1
        %s454 = scalar_lea.sflag [#allocation4], %s453
        %s455 = sand.u32 %s316, 1
        %s456 = smul.addr %s455, 8
        %s457 = scalar_lea.vmem [#allocation5], %s456
        %v459 = vld [vmem:[%s414] sm:$0xf]
        %v460 = vunpack.c.l.bf16 %v459
        %v461 = vld [vmem:[%s9] sm:$0x1]
        %v462 = vld [vmem:[%s10] sm:$0x1]
        %vm463 = vcmask 261120
        %v464 = vsel %vm463, %v460, 0.0
        %465 = vadd.xlane.f32.xlu0 %v464
        %v466 = vpop.xlane.xlu0 %465
        %v467 = vrcp.pop 32.0
        %v468 = vmul.f32 32.0, %v467
        %v469 = vsub.f32 1.0, %v468
        %v470 = vmul.f32 %v467, %v469
        %v471 = vadd.f32 %v467, %v470
        %vm472 = vweird.f32 %v467
        %v473 = vsel %vm472, %v467, %v471
        %v474 = vmul.f32 %v466, %v473
        %v475 = vsub.f32 %v460, %v474
        %v476 = vmul.f32 %v475, %v475
        %v477 = vsel %vm463, %v476, 0.0
        %478 = vadd.xlane.f32.xlu0 %v477
        %v479 = vpop.xlane.xlu0 %478
        %v480 = vmul.f32 %v479, %v473
        %v481 = vadd.f32 %v480, 1e-05
        %v482 = vrsqrt.pop %v481
        %v483 = vmul.f32 %v482, %v481
        %v484 = vmul.f32 %v483, %v482
        %v485 = vmul.f32 0.5, %v484
        %v486 = vsub.f32 1.5, %v485
        %v487 = vmul.f32 %v482, %v486
        %vm488 = vweird.f32 %v481
        %vm489 = vweird.f32 %v482
        %vm490 = vmor %vm488, %vm489
        %v491 = vsel %vm490, %v482, %v487
        %v492 = vmul.f32 %v475, %v491
        %v494 = vperm.slane %v461, 0
        %v496 = vmul.f32 %v492, %v494
        %v498 = vperm.slane %v462, 0
        %v500 = vadd.f32 %v496, %v498
        %v501 = vpack.c.bf16 %v500, %v500
        %v502 = vld [vmem:[%s1] sm:$0xf]
        %v503 = vld [vmem:[%s1 + $0x4] sm:$0xf]
        %v504 = vld [vmem:[%s1 + $0x8] sm:$0xf]
        %v505 = vld [vmem:[%s1 + $0xc] sm:$0xf]
        %v510 = vunpack.c.l.b16 %v502
        %v511 = vunpack.c.l.b16 %v503
        %v512 = vunpack.c.l.b16 %v504
        %v513 = vunpack.c.l.b16 %v505
        %v514 = vpack.c.b16 %v511, %v510
        %v515 = vpack.c.b16 %v513, %v512
        %v519 = vsel %vm463, %v501, 0
        %521 = vmatpush.bf16.msra.mxu0 0
        %522 = vmatpush.bf16.msra.mxu0 0
        %523 = vmatpush.bf16.msra.mxu0 0
        %524 = vmatpush.bf16.msra.mxu0 0
        %525 = vmatpush.bf16.msra.mxu0 0
        %526 = vmatpush.bf16.msra.mxu0 0
        %527 = vmatpush.bf16.msra.mxu0 %v515
        %528 = vmatpush.bf16.msra.mxu0 %v514
        %529 = vmatmul.bf16.gmra.mxu0 %v519
        %v530 = vpop.f32.mrf.mxu0
        %v531 = vadd.f32 0.0, %v530
        %v532 = vpop.f32.mrf.mxu0
        %533 = vdwg.mxu0
        %v534 = vld [vmem:[%s2] sm:$0x1]
        %v536 = vperm.slane %v534, 0
        %v538 = vadd.f32 %v531, %v536
        %v539 = vmul.f32 %v538, 0.35355338
        %v540 = vpack.c.bf16 %v539, %v539
        %v541 = vpack.c.bf16 %v538, %v538
        %543 = vrot.lane.b32.xlu0 %v540, 120
        %v544 = vpop.permute.xlu0 %543
        %545 = vrot.lane.b32.xlu0 %v540, 112
        %v546 = vpop.permute.xlu0 %545
        %547 = vrot.lane.b32.xlu0 %v540, 104
        %v548 = vpop.permute.xlu0 %547
        %v551 = vpack.i.b16 %v544, %v540
        %v552 = vshrl.u32 %v540, 16
        %v553 = vshrl.u32 %v544, 16
        %v554 = vpack.i.b16 %v553, %v552
        %v557 = vpack.i.b16 %v548, %v546
        %v558 = vshrl.u32 %v546, 16
        %v559 = vshrl.u32 %v548, 16
        %v560 = vpack.i.b16 %v559, %v558
        %v563 = vunpack.c.l.s4 1983009808
        %v564 = vunpack.c.0.s8 %v563
        %v565 = vperm.slane %v551, %v564
        %v568 = vunpack.c.l.s4 1983009808
        %v569 = vunpack.c.0.s8 %v568
        %v570 = vperm.slane %v557, %v569
        %v571 = vrot.slane %v570, 4
        %vm572 = vcmask 1047556
        %v573 = vsel %vm572, %v571, %v565
        %v574 = vrot.slane %v565, 4
        %v575 = vsel %vm572, %v570, %v574
        %v577 = vunpack.c.l.s4 1934713408
        %v578 = vunpack.c.0.s8 %v577
        %v579 = vperm.slane %v573, %v578
        %v581 = vunpack.c.l.s4 1934713408
        %v582 = vunpack.c.0.s8 %v581
        %v583 = vperm.slane %v575, %v582
        %v584 = vrot.slane %v579, 4
        %v585 = vsel %vm572, 0, %v584
        %v586 = vrot.slane %v583, 4
        %v587 = vsel %vm572, 0, %v586
        %v590 = vunpack.c.l.s4 1983009808
        %v591 = vunpack.c.0.s8 %v590
        %v592 = vperm.slane %v554, %v591
        %v595 = vunpack.c.l.s4 1983009808
        %v596 = vunpack.c.0.s8 %v595
        %v597 = vperm.slane %v560, %v596
        %v598 = vrot.slane %v597, 4
        %v599 = vsel %vm572, %v598, %v592
        %v600 = vrot.slane %v592, 4
        %v601 = vsel %vm572, %v597, %v600
        %v603 = vunpack.c.l.s4 1934713408
        %v604 = vunpack.c.0.s8 %v603
        %v605 = vperm.slane %v599, %v604
        %v607 = vunpack.c.l.s4 1934713408
        %v608 = vunpack.c.0.s8 %v607
        %v609 = vperm.slane %v601, %v608
        %v610 = vrot.slane %v605, 4
        %v611 = vsel %vm572, 0, %v610
        %v612 = vrot.slane %v609, 4
        %v613 = vsel %vm572, 0, %v612
        %v614 = vsel %vm572, %v586, %v579
        %v616 = vunpack.c.l.s4 1983009808
        %v617 = vunpack.c.0.s8 %v616
        %v618 = vperm.slane %v614, %v617
        %v619 = vrot.slane %v587, 4
        %v620 = vsel %vm572, %v619, %v585
        %v622 = vunpack.c.l.s4 1983009808
        %v623 = vunpack.c.0.s8 %v622
        %v624 = vperm.slane %v620, %v623
        %v625 = vrot.slane %v624, 4
        %v626 = vsel %vm572, %v625, %v618
        %v628 = vunpack.c.l.s4 1934713408
        %v629 = vunpack.c.0.s8 %v628
        %v630 = vperm.slane %v626, %v629
        %v631 = vrot.slane %v630, 4
        %v632 = vsel %vm572, 0, %v631
        %v633 = vsel %vm572, %v612, %v605
        %v635 = vunpack.c.l.s4 1983009808
        %v636 = vunpack.c.0.s8 %v635
        %v637 = vperm.slane %v633, %v636
        %v638 = vrot.slane %v613, 4
        %v639 = vsel %vm572, %v638, %v611
        %v641 = vunpack.c.l.s4 1983009808
        %v642 = vunpack.c.0.s8 %v641
        %v643 = vperm.slane %v639, %v642
        %v644 = vrot.slane %v643, 4
        %v645 = vsel %vm572, %v644, %v637
        %v647 = vunpack.c.l.s4 1934713408
        %v648 = vunpack.c.0.s8 %v647
        %v649 = vperm.slane %v645, %v648
        %v650 = vrot.slane %v649, 4
        %v651 = vsel %vm572, 0, %v650
        %v654 = vpack.i.b16 %v649, %v630
        %v655 = vshrl.u32 %v630, 16
        %v656 = vshrl.u32 %v649, 16
        %v657 = vpack.i.b16 %v656, %v655
        %v660 = vpack.i.b16 %v651, %v632
        %v661 = vshrl.u32 %v632, 16
        %v662 = vshrl.u32 %v651, 16
        %v663 = vpack.i.b16 %v662, %v661
        %665 = vrot.lane.b32.xlu0 %v541, 120
        %v666 = vpop.permute.xlu0 %665
        %667 = vrot.lane.b32.xlu0 %v541, 112
        %v668 = vpop.permute.xlu0 %667
        %669 = vrot.lane.b32.xlu0 %v541, 104
        %v670 = vpop.permute.xlu0 %669
        %671 = vrot.lane.b32.xlu0 %v541, 96
        %v672 = vpop.permute.xlu0 %671
        %673 = vrot.lane.b32.xlu0 %v666, 96
        %v674 = vpop.permute.xlu0 %673
        %675 = vrot.lane.b32.xlu0 %v668, 96
        %v676 = vpop.permute.xlu0 %675
        %677 = vrot.lane.b32.xlu0 %v670, 96
        %v678 = vpop.permute.xlu0 %677
        %v681 = vpack.i.b16 %v674, %v672
        %v682 = vshrl.u32 %v672, 16
        %v683 = vshrl.u32 %v674, 16
        %v684 = vpack.i.b16 %v683, %v682
        %v687 = vpack.i.b16 %v678, %v676
        %v688 = vshrl.u32 %v676, 16
        %v689 = vshrl.u32 %v678, 16
        %v690 = vpack.i.b16 %v689, %v688
        %v693 = vunpack.c.l.s4 1983009808
        %v694 = vunpack.c.0.s8 %v693
        %v695 = vperm.slane %v681, %v694
        %v698 = vunpack.c.l.s4 1983009808
        %v699 = vunpack.c.0.s8 %v698
        %v700 = vperm.slane %v687, %v699
        %v701 = vrot.slane %v700, 4
        %v702 = vsel %vm572, %v701, %v695
        %v703 = vrot.slane %v695, 4
        %v704 = vsel %vm572, %v700, %v703
        %v706 = vunpack.c.l.s4 1934713408
        %v707 = vunpack.c.0.s8 %v706
        %v708 = vperm.slane %v702, %v707
        %v710 = vunpack.c.l.s4 1934713408
        %v711 = vunpack.c.0.s8 %v710
        %v712 = vperm.slane %v704, %v711
        %v713 = vrot.slane %v708, 4
        %v714 = vsel %vm572, 0, %v713
        %v715 = vrot.slane %v712, 4
        %v716 = vsel %vm572, 0, %v715
        %v719 = vunpack.c.l.s4 1983009808
        %v720 = vunpack.c.0.s8 %v719
        %v721 = vperm.slane %v684, %v720
        %v724 = vunpack.c.l.s4 1983009808
        %v725 = vunpack.c.0.s8 %v724
        %v726 = vperm.slane %v690, %v725
        %v727 = vrot.slane %v726, 4
        %v728 = vsel %vm572, %v727, %v721
        %v729 = vrot.slane %v721, 4
        %v730 = vsel %vm572, %v726, %v729
        %v732 = vunpack.c.l.s4 1934713408
        %v733 = vunpack.c.0.s8 %v732
        %v734 = vperm.slane %v728, %v733
        %v736 = vunpack.c.l.s4 1934713408
        %v737 = vunpack.c.0.s8 %v736
        %v738 = vperm.slane %v730, %v737
        %v739 = vrot.slane %v734, 4
        %v740 = vsel %vm572, 0, %v739
        %v741 = vrot.slane %v738, 4
        %v742 = vsel %vm572, 0, %v741
        %743 = vxpose.xlu0.c.b16.start [1/8] %v708, 128
        %744 = vxpose.xlu0.c.b16.cont [2/8] 0, 128
        %745 = vxpose.xlu0.c.b16.cont [3/8] 0, 128
        %746 = vxpose.xlu0.c.b16.cont [4/8] 0, 128
        %747 = vxpose.xlu0.c.b16.cont [5/8] 0, 128
        %748 = vxpose.xlu0.c.b16.cont [6/8] 0, 128
        %749 = vxpose.xlu0.c.b16.cont [7/8] 0, 128
        %750 = vxpose.xlu0.c.b16.end [8/8] 0, 128
        %v751 = vpop.trf.xlu0
        %v752 = vpop.trf.xlu0
        %v753 = vpop.trf.xlu0
        %v754 = vpop.trf.xlu0
        %v755 = vpop.trf.xlu0
        %v756 = vpop.trf.xlu0
        %v757 = vpop.trf.xlu0
        %v758 = vpop.trf.xlu0
        %759 = vxpose.xlu0.c.b16.start [1/8] %v734, 128
        %760 = vxpose.xlu0.c.b16.cont [2/8] 0, 128
        %761 = vxpose.xlu0.c.b16.cont [3/8] 0, 128
        %762 = vxpose.xlu0.c.b16.cont [4/8] 0, 128
        %763 = vxpose.xlu0.c.b16.cont [5/8] 0, 128
        %764 = vxpose.xlu0.c.b16.cont [6/8] 0, 128
        %765 = vxpose.xlu0.c.b16.cont [7/8] 0, 128
        %766 = vxpose.xlu0.c.b16.end [8/8] 0, 128
        %v767 = vpop.trf.xlu0
        %v768 = vpop.trf.xlu0
        %v769 = vpop.trf.xlu0
        %v770 = vpop.trf.xlu0
        %v771 = vpop.trf.xlu0
        %v772 = vpop.trf.xlu0
        %v773 = vpop.trf.xlu0
        %v774 = vpop.trf.xlu0
        %775 = vxpose.xlu0.c.b16.start [1/8] %v714, 128
        %776 = vxpose.xlu0.c.b16.cont [2/8] 0, 128
        %777 = vxpose.xlu0.c.b16.cont [3/8] 0, 128
        %778 = vxpose.xlu0.c.b16.cont [4/8] 0, 128
        %779 = vxpose.xlu0.c.b16.cont [5/8] 0, 128
        %780 = vxpose.xlu0.c.b16.cont [6/8] 0, 128
        %781 = vxpose.xlu0.c.b16.cont [7/8] 0, 128
        %782 = vxpose.xlu0.c.b16.end [8/8] 0, 128
        %v783 = vpop.trf.xlu0
        %v784 = vpop.trf.xlu0
        %v785 = vpop.trf.xlu0
        %v786 = vpop.trf.xlu0
        %v787 = vpop.trf.xlu0
        %v788 = vpop.trf.xlu0
        %v789 = vpop.trf.xlu0
        %v790 = vpop.trf.xlu0
        %791 = vxpose.xlu0.c.b16.start [1/8] %v740, 128
        %792 = vxpose.xlu0.c.b16.cont [2/8] 0, 128
        %793 = vxpose.xlu0.c.b16.cont [3/8] 0, 128
        %794 = vxpose.xlu0.c.b16.cont [4/8] 0, 128
        %795 = vxpose.xlu0.c.b16.cont [5/8] 0, 128
        %796 = vxpose.xlu0.c.b16.cont [6/8] 0, 128
        %797 = vxpose.xlu0.c.b16.cont [7/8] 0, 128
        %798 = vxpose.xlu0.c.b16.end [8/8] 0, 128
        %v799 = vpop.trf.xlu0
        %v800 = vpop.trf.xlu0
        %v801 = vpop.trf.xlu0
        %v802 = vpop.trf.xlu0
        %v803 = vpop.trf.xlu0
        %v804 = vpop.trf.xlu0
        %v805 = vpop.trf.xlu0
        %v806 = vpop.trf.xlu0
        %807 = vxpose.xlu0.c.b16.start [1/8] %v712, 128
        %808 = vxpose.xlu0.c.b16.cont [2/8] 0, 128
        %809 = vxpose.xlu0.c.b16.cont [3/8] 0, 128
        %810 = vxpose.xlu0.c.b16.cont [4/8] 0, 128
        %811 = vxpose.xlu0.c.b16.cont [5/8] 0, 128
        %812 = vxpose.xlu0.c.b16.cont [6/8] 0, 128
        %813 = vxpose.xlu0.c.b16.cont [7/8] 0, 128
        %814 = vxpose.xlu0.c.b16.end [8/8] 0, 128
        %v815 = vpop.trf.xlu0
        %v816 = vpop.trf.xlu0
        %v817 = vpop.trf.xlu0
        %v818 = vpop.trf.xlu0
        %v819 = vpop.trf.xlu0
        %v820 = vpop.trf.xlu0
        %v821 = vpop.trf.xlu0
        %v822 = vpop.trf.xlu0
        %823 = vxpose.xlu0.c.b16.start [1/8] %v738, 128
        %824 = vxpose.xlu0.c.b16.cont [2/8] 0, 128
        %825 = vxpose.xlu0.c.b16.cont [3/8] 0, 128
        %826 = vxpose.xlu0.c.b16.cont [4/8] 0, 128
        %827 = vxpose.xlu0.c.b16.cont [5/8] 0, 128
        %828 = vxpose.xlu0.c.b16.cont [6/8] 0, 128
        %829 = vxpose.xlu0.c.b16.cont [7/8] 0, 128
        %830 = vxpose.xlu0.c.b16.end [8/8] 0, 128
        %v831 = vpop.trf.xlu0
        %v832 = vpop.trf.xlu0
        %v833 = vpop.trf.xlu0
        %v834 = vpop.trf.xlu0
        %v835 = vpop.trf.xlu0
        %v836 = vpop.trf.xlu0
        %v837 = vpop.trf.xlu0
        %v838 = vpop.trf.xlu0
        %839 = vxpose.xlu0.c.b16.start [1/8] %v716, 128
        %840 = vxpose.xlu0.c.b16.cont [2/8] 0, 128
        %841 = vxpose.xlu0.c.b16.cont [3/8] 0, 128
        %842 = vxpose.xlu0.c.b16.cont [4/8] 0, 128
        %843 = vxpose.xlu0.c.b16.cont [5/8] 0, 128
        %844 = vxpose.xlu0.c.b16.cont [6/8] 0, 128
        %845 = vxpose.xlu0.c.b16.cont [7/8] 0, 128
        %846 = vxpose.xlu0.c.b16.end [8/8] 0, 128
        %v847 = vpop.trf.xlu0
        %v848 = vpop.trf.xlu0
        %v849 = vpop.trf.xlu0
        %v850 = vpop.trf.xlu0
        %v851 = vpop.trf.xlu0
        %v852 = vpop.trf.xlu0
        %v853 = vpop.trf.xlu0
        %v854 = vpop.trf.xlu0
        %855 = vxpose.xlu0.c.b16.start [1/8] %v742, 128
        %856 = vxpose.xlu0.c.b16.cont [2/8] 0, 128
        %857 = vxpose.xlu0.c.b16.cont [3/8] 0, 128
        %858 = vxpose.xlu0.c.b16.cont [4/8] 0, 128
        %859 = vxpose.xlu0.c.b16.cont [5/8] 0, 128
        %860 = vxpose.xlu0.c.b16.cont [6/8] 0, 128
        %861 = vxpose.xlu0.c.b16.cont [7/8] 0, 128
        %862 = vxpose.xlu0.c.b16.end [8/8] 0, 128
        %v863 = vpop.trf.xlu0
        %v864 = vpop.trf.xlu0
        %v865 = vpop.trf.xlu0
        %v866 = vpop.trf.xlu0
        %v867 = vpop.trf.xlu0
        %v868 = vpop.trf.xlu0
        %v869 = vpop.trf.xlu0
        %v870 = vpop.trf.xlu0
        %v871 = vrot.slane %v815, 4
        %v872 = vsel %vm572, %v871, %v751
        %v874 = vunpack.c.l.s4 1983009808
        %v875 = vunpack.c.0.s8 %v874
        %v876 = vperm.slane %v872, %v875
        %v877 = vrot.slane %v847, 4
        %v878 = vsel %vm572, %v877, %v783
        %v880 = vunpack.c.l.s4 1983009808
        %v881 = vunpack.c.0.s8 %v880
        %v882 = vperm.slane %v878, %v881
        %v883 = vrot.slane %v882, 4
        %v884 = vsel %vm572, %v883, %v876
        %v885 = vrot.slane %v876, 4
        %v886 = vsel %vm572, %v882, %v885
        %v888 = vunpack.c.l.s4 1934713408
        %v889 = vunpack.c.0.s8 %v888
        %v890 = vperm.slane %v884, %v889
        %v892 = vunpack.c.l.s4 1934713408
        %v893 = vunpack.c.0.s8 %v892
        %v894 = vperm.slane %v886, %v893
        %v895 = vrot.slane %v890, 4
        %v896 = vsel %vm572, 0, %v895
        %v897 = vrot.slane %v894, 4
        %v898 = vsel %vm572, 0, %v897
        %v899 = vrot.slane %v831, 4
        %v900 = vsel %vm572, %v899, %v767
        %v902 = vunpack.c.l.s4 1983009808
        %v903 = vunpack.c.0.s8 %v902
        %v904 = vperm.slane %v900, %v903
        %v905 = vrot.slane %v863, 4
        %v906 = vsel %vm572, %v905, %v799
        %v908 = vunpack.c.l.s4 1983009808
        %v909 = vunpack.c.0.s8 %v908
        %v910 = vperm.slane %v906, %v909
        %v911 = vrot.slane %v910, 4
        %v912 = vsel %vm572, %v911, %v904
        %v913 = vrot.slane %v904, 4
        %v914 = vsel %vm572, %v910, %v913
        %v916 = vunpack.c.l.s4 1934713408
        %v917 = vunpack.c.0.s8 %v916
        %v918 = vperm.slane %v912, %v917
        %v920 = vunpack.c.l.s4 1934713408
        %v921 = vunpack.c.0.s8 %v920
        %v922 = vperm.slane %v914, %v921
        %v923 = vrot.slane %v918, 4
        %v924 = vsel %vm572, 0, %v923
        %v925 = vrot.slane %v922, 4
        %v926 = vsel %vm572, 0, %v925
        %v929 = vpack.i.b16 %v918, %v890
        %v931 = vshrl.u32 %v890, 16
        %v932 = vshrl.u32 %v918, 16
        %v933 = vpack.i.b16 %v932, %v931
        %v937 = vpack.i.b16 %v924, %v896
        %v939 = vshrl.u32 %v896, 16
        %v940 = vshrl.u32 %v924, 16
        %v941 = vpack.i.b16 %v940, %v939
        %v945 = vpack.i.b16 %v922, %v894
        %v947 = vshrl.u32 %v894, 16
        %v948 = vshrl.u32 %v922, 16
        %v949 = vpack.i.b16 %v948, %v947
        %v953 = vpack.i.b16 %v926, %v898
        %v955 = vshrl.u32 %v898, 16
        %v956 = vshrl.u32 %v926, 16
        %v957 = vpack.i.b16 %v956, %v955
        %959 = vxpose.xlu0.c.b16.start [1/8] %v929, 128
        %960 = vxpose.xlu0.c.b16.cont [2/8] 0, 128
        %961 = vxpose.xlu0.c.b16.cont [3/8] 0, 128
        %962 = vxpose.xlu0.c.b16.cont [4/8] 0, 128
        %963 = vxpose.xlu0.c.b16.cont [5/8] 0, 128
        %964 = vxpose.xlu0.c.b16.cont [6/8] 0, 128
        %965 = vxpose.xlu0.c.b16.cont [7/8] 0, 128
        %966 = vxpose.xlu0.c.b16.end [8/8] 0, 128
        %v967 = vpop.trf.xlu0
        %v968 = vpop.trf.xlu0
        %v969 = vpop.trf.xlu0
        %v970 = vpop.trf.xlu0
        %v971 = vpop.trf.xlu0
        %v972 = vpop.trf.xlu0
        %v973 = vpop.trf.xlu0
        %v974 = vpop.trf.xlu0
        %975 = vxpose.xlu0.c.b16.start [1/8] %v933, 128
        %976 = vxpose.xlu0.c.b16.cont [2/8] 0, 128
        %977 = vxpose.xlu0.c.b16.cont [3/8] 0, 128
        %978 = vxpose.xlu0.c.b16.cont [4/8] 0, 128
        %979 = vxpose.xlu0.c.b16.cont [5/8] 0, 128
        %980 = vxpose.xlu0.c.b16.cont [6/8] 0, 128
        %981 = vxpose.xlu0.c.b16.cont [7/8] 0, 128
        %982 = vxpose.xlu0.c.b16.end [8/8] 0, 128
        %v983 = vpop.trf.xlu0
        %v984 = vpop.trf.xlu0
        %v985 = vpop.trf.xlu0
        %v986 = vpop.trf.xlu0
        %v987 = vpop.trf.xlu0
        %v988 = vpop.trf.xlu0
        %v989 = vpop.trf.xlu0
        %v990 = vpop.trf.xlu0
        %991 = vxpose.xlu0.c.b16.start [1/8] %v937, 128
        %992 = vxpose.xlu0.c.b16.cont [2/8] 0, 128
        %993 = vxpose.xlu0.c.b16.cont [3/8] 0, 128
        %994 = vxpose.xlu0.c.b16.cont [4/8] 0, 128
        %995 = vxpose.xlu0.c.b16.cont [5/8] 0, 128
        %996 = vxpose.xlu0.c.b16.cont [6/8] 0, 128
        %997 = vxpose.xlu0.c.b16.cont [7/8] 0, 128
        %998 = vxpose.xlu0.c.b16.end [8/8] 0, 128
        %v999 = vpop.trf.xlu0
        %v1000 = vpop.trf.xlu0
        %v1001 = vpop.trf.xlu0
        %v1002 = vpop.trf.xlu0
        %v1003 = vpop.trf.xlu0
        %v1004 = vpop.trf.xlu0
        %v1005 = vpop.trf.xlu0
        %v1006 = vpop.trf.xlu0
        %1007 = vxpose.xlu0.c.b16.start [1/8] %v941, 128
        %1008 = vxpose.xlu0.c.b16.cont [2/8] 0, 128
        %1009 = vxpose.xlu0.c.b16.cont [3/8] 0, 128
        %1010 = vxpose.xlu0.c.b16.cont [4/8] 0, 128
        %1011 = vxpose.xlu0.c.b16.cont [5/8] 0, 128
        %1012 = vxpose.xlu0.c.b16.cont [6/8] 0, 128
        %1013 = vxpose.xlu0.c.b16.cont [7/8] 0, 128
        %1014 = vxpose.xlu0.c.b16.end [8/8] 0, 128
        %v1015 = vpop.trf.xlu0
        %v1016 = vpop.trf.xlu0
        %v1017 = vpop.trf.xlu0
        %v1018 = vpop.trf.xlu0
        %v1019 = vpop.trf.xlu0
        %v1020 = vpop.trf.xlu0
        %v1021 = vpop.trf.xlu0
        %v1022 = vpop.trf.xlu0
        %1023 = vxpose.xlu0.c.b16.start [1/8] %v945, 128
        %1024 = vxpose.xlu0.c.b16.cont [2/8] 0, 128
        %1025 = vxpose.xlu0.c.b16.cont [3/8] 0, 128
        %1026 = vxpose.xlu0.c.b16.cont [4/8] 0, 128
        %1027 = vxpose.xlu0.c.b16.cont [5/8] 0, 128
        %1028 = vxpose.xlu0.c.b16.cont [6/8] 0, 128
        %1029 = vxpose.xlu0.c.b16.cont [7/8] 0, 128
        %1030 = vxpose.xlu0.c.b16.end [8/8] 0, 128
        %v1031 = vpop.trf.xlu0
        %v1032 = vpop.trf.xlu0
        %v1033 = vpop.trf.xlu0
        %v1034 = vpop.trf.xlu0
        %v1035 = vpop.trf.xlu0
        %v1036 = vpop.trf.xlu0
        %v1037 = vpop.trf.xlu0
        %v1038 = vpop.trf.xlu0
        %1039 = vxpose.xlu0.c.b16.start [1/8] %v949, 128
        %1040 = vxpose.xlu0.c.b16.cont [2/8] 0, 128
        %1041 = vxpose.xlu0.c.b16.cont [3/8] 0, 128
        %1042 = vxpose.xlu0.c.b16.cont [4/8] 0, 128
        %1043 = vxpose.xlu0.c.b16.cont [5/8] 0, 128
        %1044 = vxpose.xlu0.c.b16.cont [6/8] 0, 128
        %1045 = vxpose.xlu0.c.b16.cont [7/8] 0, 128
        %1046 = vxpose.xlu0.c.b16.end [8/8] 0, 128
        %v1047 = vpop.trf.xlu0
        %v1048 = vpop.trf.xlu0
        %v1049 = vpop.trf.xlu0
        %v1050 = vpop.trf.xlu0
        %v1051 = vpop.trf.xlu0
        %v1052 = vpop.trf.xlu0
        %v1053 = vpop.trf.xlu0
        %v1054 = vpop.trf.xlu0
        %1055 = vxpose.xlu0.c.b16.start [1/8] %v953, 128
        %1056 = vxpose.xlu0.c.b16.cont [2/8] 0, 128
        %1057 = vxpose.xlu0.c.b16.cont [3/8] 0, 128
        %1058 = vxpose.xlu0.c.b16.cont [4/8] 0, 128
        %1059 = vxpose.xlu0.c.b16.cont [5/8] 0, 128
        %1060 = vxpose.xlu0.c.b16.cont [6/8] 0, 128
        %1061 = vxpose.xlu0.c.b16.cont [7/8] 0, 128
        %1062 = vxpose.xlu0.c.b16.end [8/8] 0, 128
        %v1063 = vpop.trf.xlu0
        %v1064 = vpop.trf.xlu0
        %v1065 = vpop.trf.xlu0
        %v1066 = vpop.trf.xlu0
        %v1067 = vpop.trf.xlu0
        %v1068 = vpop.trf.xlu0
        %v1069 = vpop.trf.xlu0
        %v1070 = vpop.trf.xlu0
        %1071 = vxpose.xlu0.c.b16.start [1/8] %v957, 128
        %1072 = vxpose.xlu0.c.b16.cont [2/8] 0, 128
        %1073 = vxpose.xlu0.c.b16.cont [3/8] 0, 128
        %1074 = vxpose.xlu0.c.b16.cont [4/8] 0, 128
        %1075 = vxpose.xlu0.c.b16.cont [5/8] 0, 128
        %1076 = vxpose.xlu0.c.b16.cont [6/8] 0, 128
        %1077 = vxpose.xlu0.c.b16.cont [7/8] 0, 128
        %1078 = vxpose.xlu0.c.b16.end [8/8] 0, 128
        %v1079 = vpop.trf.xlu0
        %v1080 = vpop.trf.xlu0
        %v1081 = vpop.trf.xlu0
        %v1082 = vpop.trf.xlu0
        %v1083 = vpop.trf.xlu0
        %v1084 = vpop.trf.xlu0
        %v1085 = vpop.trf.xlu0
        %v1086 = vpop.trf.xlu0
        %v1087 = vrot.slane %v1031, 4
        %v1088 = vsel %vm572, %v1087, %v967
        %v1090 = vunpack.c.l.s4 1983009808
        %v1091 = vunpack.c.0.s8 %v1090
        %v1092 = vperm.slane %v1088, %v1091
        %v1093 = vrot.slane %v1063, 4
        %v1094 = vsel %vm572, %v1093, %v999
        %v1096 = vunpack.c.l.s4 1983009808
        %v1097 = vunpack.c.0.s8 %v1096
        %v1098 = vperm.slane %v1094, %v1097
        %v1099 = vrot.slane %v1098, 4
        %v1100 = vsel %vm572, %v1099, %v1092
        %v1102 = vunpack.c.l.s4 1934713408
        %v1103 = vunpack.c.0.s8 %v1102
        %v1104 = vperm.slane %v1100, %v1103
        %v1105 = vrot.slane %v1104, 4
        %v1106 = vsel %vm572, 0, %v1105
        %v1107 = vrot.slane %v1047, 4
        %v1108 = vsel %vm572, %v1107, %v983
        %v1110 = vunpack.c.l.s4 1983009808
        %v1111 = vunpack.c.0.s8 %v1110
        %v1112 = vperm.slane %v1108, %v1111
        %v1113 = vrot.slane %v1079, 4
        %v1114 = vsel %vm572, %v1113, %v1015
        %v1116 = vunpack.c.l.s4 1983009808
        %v1117 = vunpack.c.0.s8 %v1116
        %v1118 = vperm.slane %v1114, %v1117
        %v1119 = vrot.slane %v1118, 4
        %v1120 = vsel %vm572, %v1119, %v1112
        %v1122 = vunpack.c.l.s4 1934713408
        %v1123 = vunpack.c.0.s8 %v1122
        %v1124 = vperm.slane %v1120, %v1123
        %v1125 = vrot.slane %v1124, 4
        %v1126 = vsel %vm572, 0, %v1125
        %v1129 = vpack.i.b16 %v1124, %v1104
        %v1130 = vshrl.u32 %v1104, 16
        %v1131 = vshrl.u32 %v1124, 16
        %v1132 = vpack.i.b16 %v1131, %v1130
        %v1135 = vpack.i.b16 %v1126, %v1106
        %v1136 = vshrl.u32 %v1106, 16
        %v1137 = vshrl.u32 %v1126, 16
        %v1138 = vpack.i.b16 %v1137, %v1136
        %1139 = vrot.lane.b32.xlu0 %v541, 64
        %v1140 = vpop.permute.xlu0 %1139
        %1141 = vrot.lane.b32.xlu0 %v666, 64
        %v1142 = vpop.permute.xlu0 %1141
        %1143 = vrot.lane.b32.xlu0 %v668, 64
        %v1144 = vpop.permute.xlu0 %1143
        %1145 = vrot.lane.b32.xlu0 %v670, 64
        %v1146 = vpop.permute.xlu0 %1145
        %v1149 = vpack.i.b16 %v1142, %v1140
        %v1150 = vshrl.u32 %v1140, 16
        %v1151 = vshrl.u32 %v1142, 16
        %v1152 = vpack.i.b16 %v1151, %v1150
        %v1155 = vpack.i.b16 %v1146, %v1144
        %v1156 = vshrl.u32 %v1144, 16
        %v1157 = vshrl.u32 %v1146, 16
        %v1158 = vpack.i.b16 %v1157, %v1156
        %v1161 = vunpack.c.l.s4 1983009808
        %v1162 = vunpack.c.0.s8 %v1161
        %v1163 = vperm.slane %v1149, %v1162
        %v1166 = vunpack.c.l.s4 1983009808
        %v1167 = vunpack.c.0.s8 %v1166
        %v1168 = vperm.slane %v1155, %v1167
        %v1169 = vrot.slane %v1168, 4
        %v1170 = vsel %vm572, %v1169, %v1163
        %v1171 = vrot.slane %v1163, 4
        %v1172 = vsel %vm572, %v1168, %v1171
        %v1174 = vunpack.c.l.s4 1934713408
        %v1175 = vunpack.c.0.s8 %v1174
        %v1176 = vperm.slane %v1170, %v1175
        %v1178 = vunpack.c.l.s4 1934713408
        %v1179 = vunpack.c.0.s8 %v1178
        %v1180 = vperm.slane %v1172, %v1179
        %v1181 = vrot.slane %v1176, 4
        %v1182 = vsel %vm572, 0, %v1181
        %v1183 = vrot.slane %v1180, 4
        %v1184 = vsel %vm572, 0, %v1183
        %v1187 = vunpack.c.l.s4 1983009808
        %v1188 = vunpack.c.0.s8 %v1187
        %v1189 = vperm.slane %v1152, %v1188
        %v1192 = vunpack.c.l.s4 1983009808
        %v1193 = vunpack.c.0.s8 %v1192
        %v1194 = vperm.slane %v1158, %v1193
        %v1195 = vrot.slane %v1194, 4
        %v1196 = vsel %vm572, %v1195, %v1189
        %v1197 = vrot.slane %v1189, 4
        %v1198 = vsel %vm572, %v1194, %v1197
        %v1200 = vunpack.c.l.s4 1934713408
        %v1201 = vunpack.c.0.s8 %v1200
        %v1202 = vperm.slane %v1196, %v1201
        %v1204 = vunpack.c.l.s4 1934713408
        %v1205 = vunpack.c.0.s8 %v1204
        %v1206 = vperm.slane %v1198, %v1205
        %v1207 = vrot.slane %v1202, 4
        %v1208 = vsel %vm572, 0, %v1207
        %v1209 = vrot.slane %v1206, 4
        %v1210 = vsel %vm572, 0, %v1209
        %v1211 = vsel %vm572, %v1183, %v1176
        %v1213 = vunpack.c.l.s4 1983009808
        %v1214 = vunpack.c.0.s8 %v1213
        %v1215 = vperm.slane %v1211, %v1214
        %v1216 = vrot.slane %v1184, 4
        %v1217 = vsel %vm572, %v1216, %v1182
        %v1219 = vunpack.c.l.s4 1983009808
        %v1220 = vunpack.c.0.s8 %v1219
        %v1221 = vperm.slane %v1217, %v1220
        %v1222 = vrot.slane %v1221, 4
        %v1223 = vsel %vm572, %v1222, %v1215
        %v1225 = vunpack.c.l.s4 1934713408
        %v1226 = vunpack.c.0.s8 %v1225
        %v1227 = vperm.slane %v1223, %v1226
        %v1228 = vrot.slane %v1227, 4
        %v1229 = vsel %vm572, 0, %v1228
        %v1230 = vsel %vm572, %v1209, %v1202
        %v1232 = vunpack.c.l.s4 1983009808
        %v1233 = vunpack.c.0.s8 %v1232
        %v1234 = vperm.slane %v1230, %v1233
        %v1235 = vrot.slane %v1210, 4
        %v1236 = vsel %vm572, %v1235, %v1208
        %v1238 = vunpack.c.l.s4 1983009808
        %v1239 = vunpack.c.0.s8 %v1238
        %v1240 = vperm.slane %v1236, %v1239
        %v1241 = vrot.slane %v1240, 4
        %v1242 = vsel %vm572, %v1241, %v1234
        %v1244 = vunpack.c.l.s4 1934713408
        %v1245 = vunpack.c.0.s8 %v1244
        %v1246 = vperm.slane %v1242, %v1245
        %v1247 = vrot.slane %v1246, 4
        %v1248 = vsel %vm572, 0, %v1247
        %v1251 = vpack.i.b16 %v1246, %v1227
        %v1252 = vshrl.u32 %v1227, 16
        %v1253 = vshrl.u32 %v1246, 16
        %v1254 = vpack.i.b16 %v1253, %v1252
        %v1257 = vpack.i.b16 %v1248, %v1229
        %v1258 = vshrl.u32 %v1229, 16
        %v1259 = vshrl.u32 %v1248, 16
        %v1260 = vpack.i.b16 %v1259, %v1258
        %vm1261 = vcmask 64512
        %v1263 = vsel %vm1261, %v654, 0
        %vm1265 = vcmask 1043456
        %v1267 = vsel %vm1265, %v1129, 0
        %1269 = vmatpush.bf16.msra.mxu0 0
        %1270 = vmatpush.bf16.msra.mxu0 0
        %1271 = vmatpush.bf16.msra.mxu0 0
        %1272 = vmatpush.bf16.msra.mxu0 0
        %1273 = vmatpush.bf16.msra.mxu0 0
        %1274 = vmatpush.bf16.msra.mxu0 0
        %1275 = vmatpush.bf16.msra.mxu0 0
        %1276 = vmatpush.bf16.msra.mxu0 %v1267
        %1277 = vmatmul.bf16.gmra.mxu0 %v1263
        %v1278 = vpop.f32.mrf.mxu0
        %v1279 = vadd.f32 0.0, %v1278
        %v1280 = vpop.f32.mrf.mxu0
        %1281 = vdwg.mxu0
        %v1283 = vsel %vm1261, %v657, 0
        %v1286 = vsel %vm1265, %v1132, 0
        %1288 = vmatpush.bf16.msra.mxu0 0
        %1289 = vmatpush.bf16.msra.mxu0 0
        %1290 = vmatpush.bf16.msra.mxu0 0
        %1291 = vmatpush.bf16.msra.mxu0 0
        %1292 = vmatpush.bf16.msra.mxu0 0
        %1293 = vmatpush.bf16.msra.mxu0 0
        %1294 = vmatpush.bf16.msra.mxu0 0
        %1295 = vmatpush.bf16.msra.mxu0 %v1286
        %1296 = vmatmul.bf16.gmra.mxu0 %v1283
        %v1297 = vpop.f32.mrf.mxu0
        %v1298 = vadd.f32 0.0, %v1297
        %v1299 = vpop.f32.mrf.mxu0
        %1300 = vdwg.mxu0
        %v1302 = vsel %vm1261, %v660, 0
        %v1305 = vsel %vm1265, %v1135, 0
        %1307 = vmatpush.bf16.msra.mxu0 0
        %1308 = vmatpush.bf16.msra.mxu0 0
        %1309 = vmatpush.bf16.msra.mxu0 0
        %1310 = vmatpush.bf16.msra.mxu0 0
        %1311 = vmatpush.bf16.msra.mxu0 0
        %1312 = vmatpush.bf16.msra.mxu0 0
        %1313 = vmatpush.bf16.msra.mxu0 0
        %1314 = vmatpush.bf16.msra.mxu0 %v1305
        %1315 = vmatmul.bf16.gmra.mxu0 %v1302
        %v1316 = vpop.f32.mrf.mxu0
        %v1317 = vadd.f32 0.0, %v1316
        %v1318 = vpop.f32.mrf.mxu0
        %1319 = vdwg.mxu0
        %v1321 = vsel %vm1261, %v663, 0
        %v1324 = vsel %vm1265, %v1138, 0
        %1326 = vmatpush.bf16.msra.mxu0 0
        %1327 = vmatpush.bf16.msra.mxu0 0
        %1328 = vmatpush.bf16.msra.mxu0 0
        %1329 = vmatpush.bf16.msra.mxu0 0
        %1330 = vmatpush.bf16.msra.mxu0 0
        %1331 = vmatpush.bf16.msra.mxu0 0
        %1332 = vmatpush.bf16.msra.mxu0 0
        %1333 = vmatpush.bf16.msra.mxu0 %v1324
        %1334 = vmatmul.bf16.gmra.mxu0 %v1321
        %v1335 = vpop.f32.mrf.mxu0
        %v1336 = vadd.f32 0.0, %v1335
        %v1337 = vpop.f32.mrf.mxu0
        %1338 = vdwg.mxu0
        %v1339 = vsel %vm1261, %v1279, -inf
        %1340 = vmax.xlane.f32.xlu0 %v1339
        %v1341 = vpop.xlane.xlu0 %1340
        %v1342 = vsel %vm1261, %v1298, -inf
        %1343 = vmax.xlane.f32.xlu0 %v1342
        %v1344 = vpop.xlane.xlu0 %1343
        %v1345 = vsel %vm1261, %v1317, -inf
        %1346 = vmax.xlane.f32.xlu0 %v1345
        %v1347 = vpop.xlane.xlu0 %1346
        %v1348 = vsel %vm1261, %v1336, -inf
        %1349 = vmax.xlane.f32.xlu0 %v1348
        %v1350 = vpop.xlane.xlu0 %1349
        %v1351 = vsub.f32 %v1279, %v1341
        %v1352 = vsub.f32 %v1298, %v1344
        %v1353 = vsub.f32 %v1317, %v1347
        %v1354 = vsub.f32 %v1336, %v1350
        %v1355 = vmul.f32 %v1351, 1.442695
        %v1356 = vpow.pop %v1355
        %v1357 = vmul.f32 %v1352, 1.442695
        %v1358 = vpow.pop %v1357
        %v1359 = vmul.f32 %v1353, 1.442695
        %v1360 = vpow.pop %v1359
        %v1361 = vmul.f32 %v1354, 1.442695
        %v1362 = vpow.pop %v1361
        %v1363 = vsel %vm1261, %v1356, 0.0
        %1364 = vadd.xlane.f32.xlu0 %v1363
        %v1365 = vpop.xlane.xlu0 %1364
        %v1366 = vsel %vm1261, %v1358, 0.0
        %1367 = vadd.xlane.f32.xlu0 %v1366
        %v1368 = vpop.xlane.xlu0 %1367
        %v1369 = vsel %vm1261, %v1360, 0.0
        %1370 = vadd.xlane.f32.xlu0 %v1369
        %v1371 = vpop.xlane.xlu0 %1370
        %v1372 = vsel %vm1261, %v1362, 0.0
        %1373 = vadd.xlane.f32.xlu0 %v1372
        %v1374 = vpop.xlane.xlu0 %1373
        %v1375 = vrcp.pop %v1365
        %v1376 = vrcp.pop %v1368
        %v1377 = vrcp.pop %v1371
        %v1378 = vrcp.pop %v1374
        %v1379 = vmul.f32 %v1356, %v1375
        %v1380 = vmul.f32 %v1358, %v1376
        %v1381 = vmul.f32 %v1360, %v1377
        %v1382 = vmul.f32 %v1362, %v1378
        %v1383 = vpack.c.bf16 %v1379, %v1379
        %v1384 = vpack.c.bf16 %v1380, %v1380
        %v1385 = vpack.c.bf16 %v1381, %v1381
        %v1386 = vpack.c.bf16 %v1382, %v1382
        %v1388 = vsel %vm1261, %v1383, 0
        %v1391 = vsel %vm1265, %v1251, 0
        %1393 = vmatpush.bf16.msra.mxu0 0
        %1394 = vmatpush.bf16.msra.mxu0 0
        %1395 = vmatpush.bf16.msra.mxu0 0
        %1396 = vmatpush.bf16.msra.mxu0 0
        %1397 = vmatpush.bf16.msra.mxu0 0
        %1398 = vmatpush.bf16.msra.mxu0 0
        %1399 = vmatpush.bf16.msra.mxu0 0
        %1400 = vmatpush.bf16.msra.mxu0 %v1391
        %1401 = vmatmul.bf16.gmra.mxu0 %v1388
        %v1402 = vpop.f32.mrf.mxu0
        %v1403 = vadd.f32 0.0, %v1402
        %v1404 = vpop.f32.mrf.mxu0
        %1405 = vdwg.mxu0
        %v1407 = vsel %vm1261, %v1384, 0
        %v1410 = vsel %vm1265, %v1254, 0
        %1412 = vmatpush.bf16.msra.mxu0 0
        %1413 = vmatpush.bf16.msra.mxu0 0
        %1414 = vmatpush.bf16.msra.mxu0 0
        %1415 = vmatpush.bf16.msra.mxu0 0
        %1416 = vmatpush.bf16.msra.mxu0 0
        %1417 = vmatpush.bf16.msra.mxu0 0
        %1418 = vmatpush.bf16.msra.mxu0 0
        %1419 = vmatpush.bf16.msra.mxu0 %v1410
        %1420 = vmatmul.bf16.gmra.mxu0 %v1407
        %v1421 = vpop.f32.mrf.mxu0
        %v1422 = vadd.f32 0.0, %v1421
        %v1423 = vpop.f32.mrf.mxu0
        %1424 = vdwg.mxu0
        %v1426 = vsel %vm1261, %v1385, 0
        %v1429 = vsel %vm1265, %v1257, 0
        %1431 = vmatpush.bf16.msra.mxu0 0
        %1432 = vmatpush.bf16.msra.mxu0 0
        %1433 = vmatpush.bf16.msra.mxu0 0
        %1434 = vmatpush.bf16.msra.mxu0 0
        %1435 = vmatpush.bf16.msra.mxu0 0
        %1436 = vmatpush.bf16.msra.mxu0 0
        %1437 = vmatpush.bf16.msra.mxu0 0
        %1438 = vmatpush.bf16.msra.mxu0 %v1429
        %1439 = vmatmul.bf16.gmra.mxu0 %v1426
        %v1440 = vpop.f32.mrf.mxu0
        %v1441 = vadd.f32 0.0, %v1440
        %v1442 = vpop.f32.mrf.mxu0
        %1443 = vdwg.mxu0
        %v1445 = vsel %vm1261, %v1386, 0
        %v1448 = vsel %vm1265, %v1260, 0
        %1450 = vmatpush.bf16.msra.mxu0 0
        %1451 = vmatpush.bf16.msra.mxu0 0
        %1452 = vmatpush.bf16.msra.mxu0 0
        %1453 = vmatpush.bf16.msra.mxu0 0
        %1454 = vmatpush.bf16.msra.mxu0 0
        %1455 = vmatpush.bf16.msra.mxu0 0
        %1456 = vmatpush.bf16.msra.mxu0 0
        %1457 = vmatpush.bf16.msra.mxu0 %v1448
        %1458 = vmatmul.bf16.gmra.mxu0 %v1445
        %v1459 = vpop.f32.mrf.mxu0
        %v1460 = vadd.f32 0.0, %v1459
        %v1461 = vpop.f32.mrf.mxu0
        %1462 = vdwg.mxu0
        %v1463 = vrot.slane %v1441, 4
        %vm1464 = vcmask 1047556
        %v1465 = vsel %vm1464, %v1463, %v1403
        %v1466 = vrot.slane %v1403, 4
        %v1467 = vsel %vm1464, %v1441, %v1466
        %v1469 = vunpack.c.l.s4 1983009808
        %v1470 = vunpack.c.0.s8 %v1469
        %v1471 = vperm.slane %v1465, %v1470
        %v1473 = vunpack.c.l.s4 1983009808
        %v1474 = vunpack.c.0.s8 %v1473
        %v1475 = vperm.slane %v1467, %v1474
        %v1476 = vrot.slane %v1460, 4
        %v1477 = vsel %vm1464, %v1476, %v1422
        %v1478 = vrot.slane %v1422, 4
        %v1479 = vsel %vm1464, %v1460, %v1478
        %v1481 = vunpack.c.l.s4 1983009808
        %v1482 = vunpack.c.0.s8 %v1481
        %v1483 = vperm.slane %v1477, %v1482
        %v1485 = vunpack.c.l.s4 1983009808
        %v1486 = vunpack.c.0.s8 %v1485
        %v1487 = vperm.slane %v1479, %v1486
        %v1488 = vrot.slane %v1483, 4
        %v1489 = vsel %vm1464, %v1488, %v1471
        %v1490 = vrot.slane %v1471, 4
        %v1491 = vsel %vm1464, %v1483, %v1490
        %v1493 = vunpack.c.l.s4 1934713408
        %v1494 = vunpack.c.0.s8 %v1493
        %v1495 = vperm.slane %v1489, %v1494
        %v1497 = vunpack.c.l.s4 1934713408
        %v1498 = vunpack.c.0.s8 %v1497
        %v1499 = vperm.slane %v1491, %v1498
        %v1500 = vrot.slane %v1487, 4
        %v1501 = vsel %vm1464, %v1500, %v1475
        %v1502 = vrot.slane %v1475, 4
        %v1503 = vsel %vm1464, %v1487, %v1502
        %v1505 = vunpack.c.l.s4 1934713408
        %v1506 = vunpack.c.0.s8 %v1505
        %v1507 = vperm.slane %v1501, %v1506
        %v1509 = vunpack.c.l.s4 1934713408
        %v1510 = vunpack.c.0.s8 %v1509
        %v1511 = vperm.slane %v1503, %v1510
        %v1512 = vrot.slane %v1495, 4
        %v1513 = vsel %vm1464, 0.0, %v1512
        %v1514 = vrot.slane %v1499, 4
        %v1515 = vsel %vm1464, 0.0, %v1514
        %v1516 = vrot.slane %v1507, 4
        %v1517 = vsel %vm1464, 0.0, %v1516
        %v1518 = vrot.slane %v1511, 4
        %v1519 = vsel %vm1464, 0.0, %v1518
        %v1520 = vsel %vm1464, %v1514, %v1495
        %v1522 = vunpack.c.l.s4 1983009808
        %v1523 = vunpack.c.0.s8 %v1522
        %v1524 = vperm.slane %v1520, %v1523
        %v1525 = vrot.slane %v1515, 4
        %v1526 = vsel %vm1464, %v1525, %v1513
        %v1528 = vunpack.c.l.s4 1983009808
        %v1529 = vunpack.c.0.s8 %v1528
        %v1530 = vperm.slane %v1526, %v1529
        %v1531 = vsel %vm1464, %v1518, %v1507
        %v1533 = vunpack.c.l.s4 1983009808
        %v1534 = vunpack.c.0.s8 %v1533
        %v1535 = vperm.slane %v1531, %v1534
        %v1536 = vrot.slane %v1519, 4
        %v1537 = vsel %vm1464, %v1536, %v1517
        %v1539 = vunpack.c.l.s4 1983009808
        %v1540 = vunpack.c.0.s8 %v1539
        %v1541 = vperm.slane %v1537, %v1540
        %v1542 = vrot.slane %v1530, 4
        %v1543 = vsel %vm1464, %v1542, %v1524
        %v1544 = vrot.slane %v1524, 4
        %v1545 = vsel %vm1464, %v1530, %v1544
        %v1547 = vunpack.c.l.s4 1934713408
        %v1548 = vunpack.c.0.s8 %v1547
        %v1549 = vperm.slane %v1543, %v1548
        %v1551 = vunpack.c.l.s4 1934713408
        %v1552 = vunpack.c.0.s8 %v1551
        %v1553 = vperm.slane %v1545, %v1552
        %v1554 = vrot.slane %v1541, 4
        %v1555 = vsel %vm1464, %v1554, %v1535
        %v1556 = vrot.slane %v1535, 4
        %v1557 = vsel %vm1464, %v1541, %v1556
        %v1559 = vunpack.c.l.s4 1934713408
        %v1560 = vunpack.c.0.s8 %v1559
        %v1561 = vperm.slane %v1555, %v1560
        %v1563 = vunpack.c.l.s4 1934713408
        %v1564 = vunpack.c.0.s8 %v1563
        %v1565 = vperm.slane %v1557, %v1564
        %v1566 = vrot.slane %v1561, 4
        %v1567 = vsel %vm1464, %v1566, %v1549
        %v1568 = vrot.slane %v1549, 4
        %v1569 = vsel %vm1464, %v1561, %v1568
        %v1570 = vrot.slane %v1565, 4
        %v1571 = vsel %vm1464, %v1570, %v1553
        %v1572 = vrot.slane %v1553, 4
        %v1573 = vsel %vm1464, %v1565, %v1572
        %1575 = vrot.lane.b32.xlu0 %v1569, 8
        %v1576 = vpop.permute.xlu0 %1575
        %1579 = vrot.lane.b32.xlu0 %v1571, 16
        %v1580 = vpop.permute.xlu0 %1579
        %1583 = vrot.lane.b32.xlu0 %v1573, 24
        %v1584 = vpop.permute.xlu0 %1583
        %v1586 = vsel %vm1261, %v1567, %v1576
        %vm1587 = vcmask 130048
        %v1588 = vsel %vm1587, %v1586, %v1580
        %vm1589 = vcmask 195584
        %v1590 = vsel %vm1589, %v1588, %v1584
        %v1591 = vpack.c.bf16 %v1590, %v1590
        %v1592 = vld [vmem:[%s3] sm:$0xf]
        %v1593 = vld [vmem:[%s3 + $0x4] sm:$0xf]
        %v1594 = vld [vmem:[%s3 + $0x8] sm:$0xf]
        %v1595 = vld [vmem:[%s3 + $0xc] sm:$0xf]
        %v1600 = vunpack.c.l.b16 %v1592
        %v1601 = vunpack.c.l.b16 %v1593
        %v1602 = vunpack.c.l.b16 %v1594
        %v1603 = vunpack.c.l.b16 %v1595
        %v1604 = vpack.c.b16 %v1601, %v1600
        %v1605 = vpack.c.b16 %v1603, %v1602
        %v1609 = vsel %vm463, %v1591, 0
        %1611 = vmatpush.bf16.msra.mxu0 0
        %1612 = vmatpush.bf16.msra.mxu0 0
        %1613 = vmatpush.bf16.msra.mxu0 0
        %1614 = vmatpush.bf16.msra.mxu0 0
        %1615 = vmatpush.bf16.msra.mxu0 0
        %1616 = vmatpush.bf16.msra.mxu0 0
        %1617 = vmatpush.bf16.msra.mxu0 %v1605
        %1618 = vmatpush.bf16.msra.mxu0 %v1604
        %1619 = vmatmul.bf16.gmra.mxu0 %v1609
        %v1620 = vpop.f32.mrf.mxu0
        %v1621 = vadd.f32 0.0, %v1620
        %v1622 = vpop.f32.mrf.mxu0
        %1623 = vdwg.mxu0
        %v1624 = vadd.f32 %v460, %v1621
        %v1625 = vld [vmem:[%s4] sm:$0x1]
        %v1627 = vperm.slane %v1625, 0
        %v1629 = vadd.f32 %v1624, %v1627
        %v1630 = vld [vmem:[%s11] sm:$0x1]
        %v1631 = vld [vmem:[%s12] sm:$0x1]
        %v1632 = vsel %vm463, %v1629, 0.0
        %1633 = vadd.xlane.f32.xlu0 %v1632
        %v1634 = vpop.xlane.xlu0 %1633
        %v1635 = vmul.f32 %v1634, %v473
        %v1636 = vsub.f32 %v1629, %v1635
        %v1637 = vmul.f32 %v1636, %v1636
        %v1638 = vsel %vm463, %v1637, 0.0
        %1639 = vadd.xlane.f32.xlu0 %v1638
        %v1640 = vpop.xlane.xlu0 %1639
        %v1641 = vmul.f32 %v1640, %v473
        %v1642 = vadd.f32 %v1641, 1e-05
        %v1643 = vrsqrt.pop %v1642
        %v1644 = vmul.f32 %v1643, %v1642
        %v1645 = vmul.f32 %v1644, %v1643
        %v1646 = vmul.f32 0.5, %v1645
        %v1647 = vsub.f32 1.5, %v1646
        %v1648 = vmul.f32 %v1643, %v1647
        %vm1649 = vweird.f32 %v1642
        %vm1650 = vweird.f32 %v1643
        %vm1651 = vmor %vm1649, %vm1650
        %v1652 = vsel %vm1651, %v1643, %v1648
        %v1653 = vmul.f32 %v1636, %v1652
        %v1655 = vperm.slane %v1630, 0
        %v1657 = vmul.f32 %v1653, %v1655
        %v1659 = vperm.slane %v1631, 0
        %v1661 = vadd.f32 %v1657, %v1659
        %v1662 = vpack.c.bf16 %v1661, %v1661
        %v1663 = vld [vmem:[%s5] sm:$0xf]
        %v1664 = vld [vmem:[%s5 + $0x4] sm:$0xf]
        %v1665 = vld [vmem:[%s5 + $0x8] sm:$0xf]
        %v1666 = vld [vmem:[%s5 + $0xc] sm:$0xf]
        %v1667 = vld [vmem:[%s6] sm:$0x1]
        %v1669 = vperm.slane %v1667, 0
        %v1675 = vunpack.c.l.b16 %v1663
        %v1676 = vunpack.c.l.b16 %v1664
        %v1677 = vunpack.c.l.b16 %v1665
        %v1678 = vunpack.c.l.b16 %v1666
        %v1679 = vpack.c.b16 %v1676, %v1675
        %v1680 = vpack.c.b16 %v1678, %v1677
        %v1684 = vsel %vm463, %v1662, 0
        %1686 = vmatpush.bf16.msra.mxu0 0
        %1687 = vmatpush.bf16.msra.mxu0 0
        %1688 = vmatpush.bf16.msra.mxu0 0
        %1689 = vmatpush.bf16.msra.mxu0 0
        %1690 = vmatpush.bf16.msra.mxu0 0
        %1691 = vmatpush.bf16.msra.mxu0 0
        %1692 = vmatpush.bf16.msra.mxu0 %v1680
        %1693 = vmatpush.bf16.msra.mxu0 %v1679
        %1694 = vmatmul.bf16.gmra.mxu0 %v1684
        %v1695 = vpop.f32.mrf.mxu0
        %v1696 = vadd.f32 %v1669, %v1695
        %v1697 = vpop.f32.mrf.mxu0
        %1698 = vdwg.mxu0
        %v1699 = vmax.f32 %v1696, 0.0
        %v1700 = vpack.c.bf16 %v1699, %v1699
        %v1701 = vld [vmem:[%s7] sm:$0xf]
        %v1702 = vld [vmem:[%s7 + $0x4] sm:$0xf]
        %v1703 = vld [vmem:[%s7 + $0x8] sm:$0xf]
        %v1704 = vld [vmem:[%s7 + $0xc] sm:$0xf]
        %v1705 = vld [vmem:[%s7 + $0x10] sm:$0xf]
        %v1706 = vld [vmem:[%s7 + $0x14] sm:$0xf]
        %v1707 = vld [vmem:[%s7 + $0x18] sm:$0xf]
        %v1708 = vld [vmem:[%s7 + $0x1c] sm:$0xf]
        %v1717 = vunpack.c.l.b16 %v1701
        %v1718 = vunpack.c.l.b16 %v1702
        %v1719 = vunpack.c.l.b16 %v1703
        %v1720 = vunpack.c.l.b16 %v1704
        %v1721 = vunpack.c.l.b16 %v1705
        %v1722 = vunpack.c.l.b16 %v1706
        %v1723 = vunpack.c.l.b16 %v1707
        %v1724 = vunpack.c.l.b16 %v1708
        %v1725 = vpack.c.b16 %v1718, %v1717
        %v1726 = vpack.c.b16 %v1720, %v1719
        %v1727 = vpack.c.b16 %v1722, %v1721
        %v1728 = vpack.c.b16 %v1724, %v1723
        %vm1733 = vcmask 523264
        %v1735 = vsel %vm1733, %v1700, 0
        %1737 = vmatpush.bf16.msra.mxu0 0
        %1738 = vmatpush.bf16.msra.mxu0 0
        %1739 = vmatpush.bf16.msra.mxu0 0
        %1740 = vmatpush.bf16.msra.mxu0 0
        %1741 = vmatpush.bf16.msra.mxu0 %v1728
        %1742 = vmatpush.bf16.msra.mxu0 %v1727
        %1743 = vmatpush.bf16.msra.mxu0 %v1726
        %1744 = vmatpush.bf16.msra.mxu0 %v1725
        %1745 = vmatmul.bf16.gmra.mxu0 %v1735
        %v1746 = vpop.f32.mrf.mxu0
        %v1747 = vadd.f32 0.0, %v1746
        %v1748 = vpop.f32.mrf.mxu0
        %1749 = vdwg.mxu0
        %v1750 = vadd.f32 %v1629, %v1747
        %v1751 = vld [vmem:[%s8] sm:$0x1]
        %v1753 = vperm.slane %v1751, 0
        %v1755 = vadd.f32 %v1750, %v1753
        %1756 = vst.msk [vmem:[%s457] sm:$0xff] %vm463, %v1755
        %s1757 = sand.u32 %s316, 1
        %s1758 = scalar_lea.sflag [#allocation4], %s1757
        %s1759 = sand.u32 %s316, 1
        %s1760 = smul.addr %s1759, 8
        %s1761 = scalar_lea.vmem [#allocation5], %s1760
        // Predicated region
        $region77: #{tpu_custom_call.1} parent=71 // pred_check
          %p1762 = pneg %p326
        $region78: #{tpu_custom_call.1} parent=71 // pred_check_branch
          %1764 = sbr.rel (%p1762) target = $region80
        $region79: #{tpu_custom_call.1} parent=71 // pred_region
          %1766 = vsyncadd %s1758, 0
          %s1767 = smul.addr %s30, 8
          %s1768 = scalar_lea.hbm %s13, %s1767
          %s1770 = sshll.u32 %s1761, 4
          %s1771 = int_to_ptr.vmem [resolvable:$true] %s1770
          %s1772 = sshll.u32 %s1768, 4
          %s1773 = int_to_ptr.hbm [resolvable:$true] %s1772
          %1775 = dma.vmem_to_hbm [thread:$0]  %s1771, 128, %s1773, %s1758
        $region80: #{tpu_custom_call.1} parent=71 // pred_fallthru
          _
      $region72: #{tpu_custom_call.1} parent=5 // pred_fallthru
        _
      %p1776 = scmp.le.s32.totalorder 2, %s25
      // Predicated region
      $region81: #{tpu_custom_call.1} parent=5 // pred_check
        %p1777 = pneg %p1776
      $region82: #{tpu_custom_call.1} parent=5 // pred_check_branch
        %1779 = sbr.rel (%p1777) target = $region84
      $region83: #{tpu_custom_call.1} parent=5 // pred_region
        %s1780 = ssub.s32 %s25, 2
        // Predicated region
        $region85: #{tpu_custom_call.1} parent=83 // pred_check
          %p1781 = pneg %p332
        $region86: #{tpu_custom_call.1} parent=83 // pred_check_branch
          %1783 = sbr.rel (%p1781) target = $region88
        $region87: #{tpu_custom_call.1} parent=83 // pred_region
          %s1784 = sand.u32 %s317, 1
          %s1785 = scalar_lea.sflag [#allocation4], %s1784
          %s1786 = sand.u32 %s317, 1
          %s1787 = smul.addr %s1786, 8
          %s1788 = scalar_lea.vmem [#allocation5], %s1787
          %1790 = dma.done %s1785, 128
        $region88: #{tpu_custom_call.1} parent=83 // pred_fallthru
          _
      $region84: #{tpu_custom_call.1} parent=5 // pred_fallthru
        _
    $region6: #{tpu_custom_call.1} parent=1 // loop_footer
      %s29 = sadd.s32 1, %s25
    $region7: #{tpu_custom_call.1} parent=1 // loop_footer_branch
      %24 = sbr.rel target = $region3
    $region8: #{tpu_custom_call.1} parent=1 // loop_exit
      _
    %1791 = vsyncpa [#allocation3], 1
    %s1792 = scalar_lea.sflag [#allocation3], 1
    %1793 = vsyncpa %s1792, 1
    %1794 = vsyncpa [#allocation4], 1
    %s1795 = scalar_lea.sflag [#allocation4], 1
    %1796 = vsyncpa %s1795, 1

</llo_original>
